<compile_context>
chip_gen: v6e
topology: v6e:2x2x1
jax: 0.10.0
libtpu: 0.0.40
codegen_flags: <defaults>
</compile_context>

<pallas_src>
import jax
import jax.numpy as jnp
import numpy as np
from jax import lax
from jax.experimental import pallas as pl
from jax.experimental.pallas import tpu as pltpu


def _dwsep_kernel(xb_ref, xt_ref, xbt_ref, wdw_ref, b1_ref, wpw_ref, b2_ref, o_ref):
    # xb_ref : (1, RT, W, Cin) bf16   body rows of this tile
    # xt_ref : (1, 1, W, Cin)  bf16   row above the tile (clamped; masked at top edge)
    # xbt_ref: (1, 1, W, Cin)  bf16   row below the tile (clamped; masked at bottom edge)
    # wdw_ref: (3, 3, Cin)     f32    depthwise weights, BN1 scale folded in
    # b1_ref : (1, Cin)        f32    folded BN1 bias
    # wpw_ref: (Cin, Cout)     bf16   pointwise weights, BN2 scale folded in
    # b2_ref : (1, Cout)       f32    folded BN2 bias
    # o_ref  : (1, RT*W, Cout) bf16   output tile, rows flattened (t, w) row-major
    RT, W, Cin = xb_ref.shape[1], xb_ref.shape[2], xb_ref.shape[3]

    h = pl.program_id(1)
    nh = pl.num_programs(1)

    # Upcast once (f32 accumulation everywhere; HBM stream stays bf16).
    body = xb_ref[0].astype(jnp.float32)                              # (RT, W, Cin)
    top = xt_ref[0].astype(jnp.float32) * (h > 0).astype(jnp.float32)          # (1, W, Cin)
    bot = xbt_ref[0].astype(jnp.float32) * (h < nh - 1).astype(jnp.float32)    # (1, W, Cin)

    # Vertically extended window; zero rows at the image edges implement padding=1 in H.
    xw = jnp.concatenate([top, body, bot], axis=0)                    # (RT+2, W, Cin)

    # Horizontal taps: cyclic XLU rolls along the sublane (W) axis + edge masks
    # implement padding=1 in W without any padded copy of the input.
    col = lax.broadcasted_iota(jnp.int32, (W, Cin), 0)
    lmask = (col > 0).astype(jnp.float32)          # kills the wrapped column at w == 0
    rmask = (col < W - 1).astype(jnp.float32)      # kills the wrapped column at w == W-1
    xl = pltpu.roll(xw, shift=1, axis=1) * lmask        # x[..., w-1, :]
    xr = pltpu.roll(xw, shift=W - 1, axis=1) * rmask    # x[..., w+1, :]

    # Depthwise 3x3, stride 1: 9 per-channel MACs on the VPU; leading-dim slices of the
    # extended window are free plane selects.  BN1 scale already folded into wdw.
    wk = wdw_ref[...]
    acc = None
    for dw, xs in enumerate((xl, xw, xr)):
        for dh in range(3):
            t = xs[dh:dh + RT] * wk[dh, dw]
            acc = t if acc is None else acc + t
    y = jnp.maximum(acc + b1_ref[0], 0.0)                             # BN1 bias + ReLU

    # Pointwise 1x1 conv == channel matmul on the MXU: bf16 operands, f32 accumulate.
    y2 = y.reshape(RT * W, Cin).astype(jnp.bfloat16)
    z = jnp.dot(y2, wpw_ref[...], preferred_element_type=jnp.float32)
    o_ref[0] = jnp.maximum(z + b2_ref[...], 0.0).astype(o_ref.dtype)  # BN2 bias + ReLU


def _pick_row_tile(N, H, W, Cin, Cout, budget_bytes=12 << 20):
    # Approximate VMEM bytes resident per grid step, per output row:
    #   double-buffered bf16 body rows + 4 f32 window copies (xw/xl/xr/acc)
    #   + f32 y + bf16 matmul LHS + f32 matmul result + double-buffered bf16 output.
    per_row = W * Cin * (2 * 2 + 4 * 4 + 4 + 2) + W * Cout * (4 + 2 * 2)
    cap = max(1, budget_bytes // max(per_row, 1))

    best = None
    for rt in range(1, H + 1):           # largest divisor of H that fits the budget,
        if H % rt:                       # preferring sublane-aligned flattened tiles
            continue
        if rt <= cap and (rt == H or (rt * W) % 16 == 0):
            best = rt
    if best is None:
        best = max((rt for rt in range(1, H + 1) if H % rt == 0 and rt <= cap),
                   default=H)
    # Keep the pipeline (and both v7x TensorCores) busy: >= 2 grid steps when possible.
    if N * (H // best) < 2:
        for rt in range(best - 1, 0, -1):
            if H % rt == 0:
                best = rt
                break
    return best


def depthwise_separable_conv(x_nchw, w_dw, w_pw,
                             g1, b1, rm1, rv1,
                             g2, b2, rm2, rv2,
                             eps=1e-5, row_tile=None):
    """x_nchw: (N, Cin, H, W); w_dw: (Cin, 1, 3, 3); w_pw: (Cout, Cin, 1, 1)."""
    N, Cin, H, W = x_nchw.shape
    Cout = w_pw.shape[0]

    if row_tile is None:
        row_tile = _pick_row_tile(N, H, W, Cin, Cout)
    assert H % row_tile == 0, "H must be divisible by row_tile"
    if row_tile != H and (row_tile * W) % 8 != 0:
        row_tile = H   # keep the flattened output block legal / sublane-aligned

    # --- single fused HBM preprocessing pass: NCHW f32 -> NHWC bf16 (no padding) ---
    x_nhwc = jnp.transpose(x_nchw, (0, 2, 3, 1)).astype(jnp.bfloat16)   # (N, H, W, Cin)

    # BN folding into the conv weights (exact for eval-mode BN; both convs are linear).
    s1 = (g1 / jnp.sqrt(rv1 + eps)).astype(jnp.float32)
    bb1 = (b1 - rm1 * s1).astype(jnp.float32)
    s2 = (g2 / jnp.sqrt(rv2 + eps)).astype(jnp.float32)
    bb2 = (b2 - rm2 * s2).astype(jnp.float32)
    wdw = (jnp.transpose(w_dw[:, 0, :, :], (1, 2, 0)) * s1[None, None, :]).astype(jnp.float32)
    wpw = (jnp.transpose(w_pw[:, :, 0, 0], (1, 0)) * s2[None, :]).astype(jnp.bfloat16)

    # Per-step VMEM footprint estimate -> explicit vmem limit with headroom.
    rt = row_tile
    step_bytes = (2 * (rt + 2) * W * Cin * 2       # double-buffered bf16 input (body+halo)
                  + 4 * (rt + 2) * W * Cin * 4     # xw, xl, xr, acc (f32)
                  + rt * W * Cin * (4 + 2)         # y (f32) + matmul LHS (bf16)
                  + rt * W * Cout * 4              # pointwise f32 result
                  + 2 * rt * W * Cout * 2          # double-buffered bf16 output
                  + 9 * Cin * 4 + Cin * Cout * 2 + (Cin + Cout) * 4)
    try:
        vmem_cap = int(pltpu.get_tpu_info().vmem_capacity_bytes)
    except Exception:
        vmem_cap = 64 << 20                        # v7x per-core VMEM (smallest gen)
    vmem_limit = int(min(vmem_cap - (16 << 20), max(32 << 20, 2 * step_bytes)))

    flops = int(2 * N * H * W * Cin * 9 + 2 * N * H * W * Cin * Cout)
    bytes_accessed = int(2 * N * (H + 2 * (H // row_tile)) * W * Cin   # bf16 in + halo re-reads
                         + 2 * N * H * W * Cout                        # bf16 out
                         + 4 * 9 * Cin + 2 * Cin * Cout + 4 * (Cin + Cout))

    out_flat = pl.pallas_call(
        _dwsep_kernel,
        out_shape=jax.ShapeDtypeStruct((N, H * W, Cout), jnp.bfloat16),
        grid_spec=pltpu.PrefetchScalarGridSpec(
            num_scalar_prefetch=0,
            grid=(N, H // row_tile),
            in_specs=[
                # Body rows of the tile.
                pl.BlockSpec((1, row_tile, W, Cin), lambda n, h: (n, h, 0, 0)),
                # Halo row above (block size 1 on H => index map returns the row index;
                # clamped at the top edge and zero-masked in-kernel).
                pl.BlockSpec((1, 1, W, Cin),
                             lambda n, h: (n, jnp.maximum(h * row_tile - 1, 0), 0, 0)),
                # Halo row below (clamped at the bottom edge, masked in-kernel).
                pl.BlockSpec((1, 1, W, Cin),
                             lambda n, h: (n, jnp.minimum((h + 1) * row_tile, H - 1), 0, 0)),
                pl.BlockSpec((3, 3, Cin), lambda n, h: (0, 0, 0)),
                pl.BlockSpec((1, Cin), lambda n, h: (0, 0)),
                pl.BlockSpec((Cin, Cout), lambda n, h: (0, 0)),
                pl.BlockSpec((1, Cout), lambda n, h: (0, 0)),
            ],
            out_specs=pl.BlockSpec((1, row_tile * W, Cout), lambda n, h: (n, h, 0)),
        ),
        compiler_params=pltpu.CompilerParams(
            dimension_semantics=("parallel", "parallel"),
            vmem_limit_bytes=vmem_limit),
        cost_estimate=pl.CostEstimate(
            flops=flops, transcendentals=0, bytes_accessed=bytes_accessed),
    )(x_nhwc, x_nhwc, x_nhwc, wdw, bb1.reshape(1, Cin), wpw, bb2.reshape(1, Cout))

    out_nhwc = out_flat.reshape(N, H, W, Cout)
    # Transpose back to NCHW (reads the half-width bf16 result) and restore f32;
    # XLA fuses the convert into the transpose pass.
    return jnp.transpose(out_nhwc, (0, 3, 1, 2)).astype(jnp.float32)


def _reference(x, w_dw, w_pw, g1, b1, rm1, rv1, g2, b2, rm2, rv2, eps=1e-5):
    """Pure-JAX reference mirroring the PyTorch forward (eval-mode BN, f32)."""
    Cin = x.shape[1]
    y = lax.conv_general_dilated(
        x, w_dw, window_strides=(1, 1), padding=((1, 1), (1, 1)),
        dimension_numbers=("NCHW", "OIHW", "NCHW"), feature_group_count=Cin)
    y = (y - rm1[None, :, None, None]) / jnp.sqrt(rv1[None, :, None, None] + eps)
    y = y * g1[None, :, None, None] + b1[None, :, None, None]
    y = jnp.maximum(y, 0.0)
    z = lax.conv_general_dilated(
        y, w_pw, window_strides=(1, 1), padding=((0, 0), (0, 0)),
        dimension_numbers=("NCHW", "OIHW", "NCHW"))
    z = (z - rm2[None, :, None, None]) / jnp.sqrt(rv2[None, :, None, None] + eps)
    z = z * g2[None, :, None, None] + b2[None, :, None, None]
    return jnp.maximum(z, 0.0)


if __name__ == "__main__":
    key = jax.random.PRNGKey(0)
    N, Cin, Cout, H, W = 2, 4, 8, 16, 16

    ks = jax.random.split(key, 8)
    x = jax.random.normal(ks[0], (N, Cin, H, W), jnp.float32)
    w_dw = jax.random.normal(ks[1], (Cin, 1, 3, 3), jnp.float32) * 0.3
    w_pw = jax.random.normal(ks[2], (Cout, Cin, 1, 1), jnp.float32) * 0.3

    # Deterministic (non-trivial) BatchNorm parameters / running stats.
    g1 = 1.0 + 0.1 * jax.random.normal(ks[3], (Cin,), jnp.float32)
    b1 = 0.1 * jax.random.normal(ks[4], (Cin,), jnp.float32)
    rm1 = 0.05 * jax.random.normal(ks[5], (Cin,), jnp.float32)
    rv1 = 1.0 + 0.1 * jnp.abs(jax.random.normal(ks[6], (Cin,), jnp.float32))
    g2 = jnp.ones((Cout,), jnp.float32)
    b2 = jnp.zeros((Cout,), jnp.float32)
    rm2 = jnp.zeros((Cout,), jnp.float32)
    rv2 = jnp.ones((Cout,), jnp.float32)

    ref = _reference(x, w_dw, w_pw, g1, b1, rm1, rv1, g2, b2, rm2, rv2)

    fn = jax.jit(depthwise_separable_conv, static_argnames=("row_tile",))

    # Tolerance reflects intentional bf16 HBM streams (input/output) and bf16 MXU
    # operands for the pointwise stage; all accumulation is f32.
    # 1) auto row_tile (tiny image -> one tile per batch element, grid over N only)
    out = jax.block_until_ready(fn(x, w_dw, w_pw, g1, b1, rm1, rv1, g2, b2, rm2, rv2))
    np.testing.assert_allclose(np.asarray(out), np.asarray(ref), rtol=3e-2, atol=3e-2)

    # 2) forced multi-tile path to exercise the halo rows and the edge masks
    out2 = jax.block_until_ready(
        fn(x, w_dw, w_pw, g1, b1, rm1, rv1, g2, b2, rm2, rv2, row_tile=8))
    np.testing.assert_allclose(np.asarray(out2), np.asarray(ref), rtol=3e-2, atol=3e-2)

    print("KERNEL_OK")
</pallas_src>

<mosaic_0001>
module attributes {stable_mosaic.version = 11 : i64} {
  func.func @_dwsep_kernel(%arg0: i32, %arg1: i32, %arg2: memref<1x16x16x4xbf16, #tpu.memory_space<vmem>>, %arg3: memref<1x1x16x4xbf16, #tpu.memory_space<vmem>>, %arg4: memref<1x1x16x4xbf16, #tpu.memory_space<vmem>>, %arg5: memref<3x3x4xf32, #tpu.memory_space<vmem>>, %arg6: memref<1x4xf32, #tpu.memory_space<vmem>>, %arg7: memref<4x8xbf16, #tpu.memory_space<vmem>>, %arg8: memref<1x8xf32, #tpu.memory_space<vmem>>, %arg9: memref<1x256x8xbf16, #tpu.memory_space<vmem>>) attributes {dimension_semantics = [#tpu.dimension_semantics<parallel>, #tpu.dimension_semantics<parallel>], iteration_bounds = array<i64: 2, 1>, scalar_prefetch = 0 : i64, scratch_operands = 0 : i64, tpu.core_type = #tpu.core_type<tc>, window_params = [{transform_indices = @transform_0, window_bounds = array<i64: 1, 16, 16, 4>}, {transform_indices = @transform_1, window_bounds = array<i64: 1, 1, 16, 4>}, {transform_indices = @transform_2, window_bounds = array<i64: 1, 1, 16, 4>}, {pipeline_mode = #tpu.pipeline_mode<synchronous>, transform_indices = @transform_3, window_bounds = array<i64: 3, 3, 4>}, {pipeline_mode = #tpu.pipeline_mode<synchronous>, transform_indices = @transform_4, window_bounds = array<i64: 1, 4>}, {pipeline_mode = #tpu.pipeline_mode<synchronous>, transform_indices = @transform_5, window_bounds = array<i64: 4, 8>}, {pipeline_mode = #tpu.pipeline_mode<synchronous>, transform_indices = @transform_6, window_bounds = array<i64: 1, 8>}, {transform_indices = @transform_7, window_bounds = array<i64: 1, 256, 8>}]} {
    %c0 = arith.constant 0 : index
    %c0_0 = arith.constant 0 : index
    %c0_1 = arith.constant 0 : index
    %c0_2 = arith.constant 0 : index
    %0 = vector.load %arg2[%c0, %c0_0, %c0_1, %c0_2] : memref<1x16x16x4xbf16, #tpu.memory_space<vmem>>, vector<1x16x16x4xbf16>
    %1 = vector.shape_cast %0 : vector<1x16x16x4xbf16> to vector<16x16x4xbf16>
    %2 = arith.extf %1 : vector<16x16x4xbf16> to vector<16x16x4xf32>
    %c0_3 = arith.constant 0 : index
    %c0_4 = arith.constant 0 : index
    %c0_5 = arith.constant 0 : index
    %c0_6 = arith.constant 0 : index
    %3 = vector.load %arg3[%c0_3, %c0_4, %c0_5, %c0_6] : memref<1x1x16x4xbf16, #tpu.memory_space<vmem>>, vector<1x1x16x4xbf16>
    %4 = vector.shape_cast %3 : vector<1x1x16x4xbf16> to vector<1x16x4xbf16>
    %5 = arith.extf %4 : vector<1x16x4xbf16> to vector<1x16x4xf32>
    %c0_i32 = arith.constant 0 : i32
    %6 = arith.cmpi sgt, %arg1, %c0_i32 : i32
    %7 = arith.extui %6 : i1 to i32
    %8 = arith.sitofp %7 : i32 to f32
    %9 = vector.broadcast %8 : f32 to vector<1x16x4xf32>
    %10 = arith.mulf %5, %9 : vector<1x16x4xf32>
    %c0_7 = arith.constant 0 : index
    %c0_8 = arith.constant 0 : index
    %c0_9 = arith.constant 0 : index
    %c0_10 = arith.constant 0 : index
    %11 = vector.load %arg4[%c0_7, %c0_8, %c0_9, %c0_10] : memref<1x1x16x4xbf16, #tpu.memory_space<vmem>>, vector<1x1x16x4xbf16>
    %12 = vector.shape_cast %11 : vector<1x1x16x4xbf16> to vector<1x16x4xbf16>
    %13 = arith.extf %12 : vector<1x16x4xbf16> to vector<1x16x4xf32>
    %c0_i32_11 = arith.constant 0 : i32
    %14 = arith.cmpi slt, %arg1, %c0_i32_11 : i32
    %15 = arith.extui %14 : i1 to i32
    %16 = arith.sitofp %15 : i32 to f32
    %17 = vector.broadcast %16 : f32 to vector<1x16x4xf32>
    %18 = arith.mulf %13, %17 : vector<1x16x4xf32>
    %19 = tpu.concatenate %10, %2, %18 in 0 : vector<1x16x4xf32>, vector<16x16x4xf32>, vector<1x16x4xf32> -> vector<18x16x4xf32>
    %20 = tpu.iota {dimensions = array<i32: 0>} : vector<16x4xi32>
    %c0_i32_12 = arith.constant 0 : i32
    %21 = vector.broadcast %c0_i32_12 : i32 to vector<16x4xi32>
    %22 = arith.cmpi sgt, %20, %21 : vector<16x4xi32>
    %23 = arith.extui %22 : vector<16x4xi1> to vector<16x4xi32>
    %24 = arith.sitofp %23 : vector<16x4xi32> to vector<16x4xf32>
    %c15_i32 = arith.constant 15 : i32
    %25 = vector.broadcast %c15_i32 : i32 to vector<16x4xi32>
    %26 = arith.cmpi slt, %20, %25 : vector<16x4xi32>
    %27 = arith.extui %26 : vector<16x4xi1> to vector<16x4xi32>
    %28 = arith.sitofp %27 : vector<16x4xi32> to vector<16x4xf32>
    %c1_i32 = arith.constant 1 : i32
    %29 = tpu.dynamic_rotate %19 by %c1_i32 dim 1 : vector<18x16x4xf32>, i32 -> vector<18x16x4xf32>
    %30 = vector.shape_cast %24 : vector<16x4xf32> to vector<1x16x4xf32>
    %31 = vector.broadcast %30 : vector<1x16x4xf32> to vector<18x16x4xf32>
    %32 = arith.mulf %29, %31 : vector<18x16x4xf32>
    %c15_i32_13 = arith.constant 15 : i32
    %33 = tpu.dynamic_rotate %19 by %c15_i32_13 dim 1 : vector<18x16x4xf32>, i32 -> vector<18x16x4xf32>
    %34 = vector.shape_cast %28 : vector<16x4xf32> to vector<1x16x4xf32>
    %35 = vector.broadcast %34 : vector<1x16x4xf32> to vector<18x16x4xf32>
    %36 = arith.mulf %33, %35 : vector<18x16x4xf32>
    %c0_14 = arith.constant 0 : index
    %c0_15 = arith.constant 0 : index
    %c0_16 = arith.constant 0 : index
    %37 = vector.load %arg5[%c0_14, %c0_15, %c0_16] : memref<3x3x4xf32, #tpu.memory_space<vmem>>, vector<3x3x4xf32>
    %38 = vector.extract_strided_slice %32 {offsets = [0, 0, 0], sizes = [16, 16, 4], strides = [1, 1, 1]} : vector<18x16x4xf32> to vector<16x16x4xf32>
    %39 = vector.extract_strided_slice %37 {offsets = [0, 0, 0], sizes = [1, 1, 4], strides = [1, 1, 1]} : vector<3x3x4xf32> to vector<1x1x4xf32>
    %40 = vector.shape_cast %39 : vector<1x1x4xf32> to vector<4xf32>
    %41 = vector.shape_cast %40 : vector<4xf32> to vector<1x1x4xf32>
    %42 = vector.broadcast %41 : vector<1x1x4xf32> to vector<16x16x4xf32>
    %43 = arith.mulf %38, %42 : vector<16x16x4xf32>
    %44 = vector.extract_strided_slice %32 {offsets = [1, 0, 0], sizes = [16, 16, 4], strides = [1, 1, 1]} : vector<18x16x4xf32> to vector<16x16x4xf32>
    %45 = vector.extract_strided_slice %37 {offsets = [1, 0, 0], sizes = [1, 1, 4], strides = [1, 1, 1]} : vector<3x3x4xf32> to vector<1x1x4xf32>
    %46 = vector.shape_cast %45 : vector<1x1x4xf32> to vector<4xf32>
    %47 = vector.shape_cast %46 : vector<4xf32> to vector<1x1x4xf32>
    %48 = vector.broadcast %47 : vector<1x1x4xf32> to vector<16x16x4xf32>
    %49 = arith.mulf %44, %48 : vector<16x16x4xf32>
    %50 = arith.addf %43, %49 : vector<16x16x4xf32>
    %51 = vector.extract_strided_slice %32 {offsets = [2, 0, 0], sizes = [16, 16, 4], strides = [1, 1, 1]} : vector<18x16x4xf32> to vector<16x16x4xf32>
    %52 = vector.extract_strided_slice %37 {offsets = [2, 0, 0], sizes = [1, 1, 4], strides = [1, 1, 1]} : vector<3x3x4xf32> to vector<1x1x4xf32>
    %53 = vector.shape_cast %52 : vector<1x1x4xf32> to vector<4xf32>
    %54 = vector.shape_cast %53 : vector<4xf32> to vector<1x1x4xf32>
    %55 = vector.broadcast %54 : vector<1x1x4xf32> to vector<16x16x4xf32>
    %56 = arith.mulf %51, %55 : vector<16x16x4xf32>
    %57 = arith.addf %50, %56 : vector<16x16x4xf32>
    %58 = vector.extract_strided_slice %19 {offsets = [0, 0, 0], sizes = [16, 16, 4], strides = [1, 1, 1]} : vector<18x16x4xf32> to vector<16x16x4xf32>
    %59 = vector.extract_strided_slice %37 {offsets = [0, 1, 0], sizes = [1, 1, 4], strides = [1, 1, 1]} : vector<3x3x4xf32> to vector<1x1x4xf32>
    %60 = vector.shape_cast %59 : vector<1x1x4xf32> to vector<4xf32>
    %61 = vector.shape_cast %60 : vector<4xf32> to vector<1x1x4xf32>
    %62 = vector.broadcast %61 : vector<1x1x4xf32> to vector<16x16x4xf32>
    %63 = arith.mulf %58, %62 : vector<16x16x4xf32>
    %64 = arith.addf %57, %63 : vector<16x16x4xf32>
    %65 = vector.extract_strided_slice %19 {offsets = [1, 0, 0], sizes = [16, 16, 4], strides = [1, 1, 1]} : vector<18x16x4xf32> to vector<16x16x4xf32>
    %66 = vector.extract_strided_slice %37 {offsets = [1, 1, 0], sizes = [1, 1, 4], strides = [1, 1, 1]} : vector<3x3x4xf32> to vector<1x1x4xf32>
    %67 = vector.shape_cast %66 : vector<1x1x4xf32> to vector<4xf32>
    %68 = vector.shape_cast %67 : vector<4xf32> to vector<1x1x4xf32>
    %69 = vector.broadcast %68 : vector<1x1x4xf32> to vector<16x16x4xf32>
    %70 = arith.mulf %65, %69 : vector<16x16x4xf32>
    %71 = arith.addf %64, %70 : vector<16x16x4xf32>
    %72 = vector.extract_strided_slice %19 {offsets = [2, 0, 0], sizes = [16, 16, 4], strides = [1, 1, 1]} : vector<18x16x4xf32> to vector<16x16x4xf32>
    %73 = vector.extract_strided_slice %37 {offsets = [2, 1, 0], sizes = [1, 1, 4], strides = [1, 1, 1]} : vector<3x3x4xf32> to vector<1x1x4xf32>
    %74 = vector.shape_cast %73 : vector<1x1x4xf32> to vector<4xf32>
    %75 = vector.shape_cast %74 : vector<4xf32> to vector<1x1x4xf32>
    %76 = vector.broadcast %75 : vector<1x1x4xf32> to vector<16x16x4xf32>
    %77 = arith.mulf %72, %76 : vector<16x16x4xf32>
    %78 = arith.addf %71, %77 : vector<16x16x4xf32>
    %79 = vector.extract_strided_slice %36 {offsets = [0, 0, 0], sizes = [16, 16, 4], strides = [1, 1, 1]} : vector<18x16x4xf32> to vector<16x16x4xf32>
    %80 = vector.extract_strided_slice %37 {offsets = [0, 2, 0], sizes = [1, 1, 4], strides = [1, 1, 1]} : vector<3x3x4xf32> to vector<1x1x4xf32>
    %81 = vector.shape_cast %80 : vector<1x1x4xf32> to vector<4xf32>
    %82 = vector.shape_cast %81 : vector<4xf32> to vector<1x1x4xf32>
    %83 = vector.broadcast %82 : vector<1x1x4xf32> to vector<16x16x4xf32>
    %84 = arith.mulf %79, %83 : vector<16x16x4xf32>
    %85 = arith.addf %78, %84 : vector<16x16x4xf32>
    %86 = vector.extract_strided_slice %36 {offsets = [1, 0, 0], sizes = [16, 16, 4], strides = [1, 1, 1]} : vector<18x16x4xf32> to vector<16x16x4xf32>
    %87 = vector.extract_strided_slice %37 {offsets = [1, 2, 0], sizes = [1, 1, 4], strides = [1, 1, 1]} : vector<3x3x4xf32> to vector<1x1x4xf32>
    %88 = vector.shape_cast %87 : vector<1x1x4xf32> to vector<4xf32>
    %89 = vector.shape_cast %88 : vector<4xf32> to vector<1x1x4xf32>
    %90 = vector.broadcast %89 : vector<1x1x4xf32> to vector<16x16x4xf32>
    %91 = arith.mulf %86, %90 : vector<16x16x4xf32>
    %92 = arith.addf %85, %91 : vector<16x16x4xf32>
    %93 = vector.extract_strided_slice %36 {offsets = [2, 0, 0], sizes = [16, 16, 4], strides = [1, 1, 1]} : vector<18x16x4xf32> to vector<16x16x4xf32>
    %94 = vector.extract_strided_slice %37 {offsets = [2, 2, 0], sizes = [1, 1, 4], strides = [1, 1, 1]} : vector<3x3x4xf32> to vector<1x1x4xf32>
    %95 = vector.shape_cast %94 : vector<1x1x4xf32> to vector<4xf32>
    %96 = vector.shape_cast %95 : vector<4xf32> to vector<1x1x4xf32>
    %97 = vector.broadcast %96 : vector<1x1x4xf32> to vector<16x16x4xf32>
    %98 = arith.mulf %93, %97 : vector<16x16x4xf32>
    %99 = arith.addf %92, %98 : vector<16x16x4xf32>
    %c0_17 = arith.constant 0 : index
    %c0_18 = arith.constant 0 : index
    %100 = vector.load %arg6[%c0_17, %c0_18] : memref<1x4xf32, #tpu.memory_space<vmem>>, vector<1x4xf32>
    %101 = vector.shape_cast %100 : vector<1x4xf32> to vector<4xf32>
    %102 = vector.shape_cast %101 : vector<4xf32> to vector<1x1x4xf32>
    %103 = vector.broadcast %102 : vector<1x1x4xf32> to vector<16x16x4xf32>
    %104 = arith.addf %99, %103 : vector<16x16x4xf32>
    %cst = arith.constant 0.000000e+00 : f32
    %105 = vector.broadcast %cst : f32 to vector<16x16x4xf32>
    %106 = arith.maximumf %104, %105 : vector<16x16x4xf32>
    %107 = vector.shape_cast %106 : vector<16x16x4xf32> to vector<256x4xf32>
    %108 = arith.truncf %107 : vector<256x4xf32> to vector<256x4xbf16>
    %c0_19 = arith.constant 0 : index
    %c0_20 = arith.constant 0 : index
    %109 = vector.load %arg7[%c0_19, %c0_20] : memref<4x8xbf16, #tpu.memory_space<vmem>>, vector<4x8xbf16>
    %cst_21 = arith.constant dense<0.000000e+00> : vector<256x8xf32>
    %110 = tpu.matmul %108, %109, %cst_21 {dimension_numbers = #tpu.dot_dimension_numbers<[1], [0], [0], [1], [0, 0, 1, 1], [], []>} : vector<256x4xbf16>, vector<4x8xbf16>, vector<256x8xf32> -> vector<256x8xf32>
    %c0_22 = arith.constant 0 : index
    %c0_23 = arith.constant 0 : index
    %111 = vector.load %arg8[%c0_22, %c0_23] : memref<1x8xf32, #tpu.memory_space<vmem>>, vector<1x8xf32>
    %112 = vector.broadcast %111 : vector<1x8xf32> to vector<256x8xf32>
    %113 = arith.addf %110, %112 : vector<256x8xf32>
    %cst_24 = arith.constant 0.000000e+00 : f32
    %114 = vector.broadcast %cst_24 : f32 to vector<256x8xf32>
    %115 = arith.maximumf %113, %114 : vector<256x8xf32>
    %116 = arith.truncf %115 : vector<256x8xf32> to vector<256x8xbf16>
    %c0_25 = arith.constant 0 : index
    %c0_26 = arith.constant 0 : index
    %c0_27 = arith.constant 0 : index
    %117 = vector.load %arg9[%c0_25, %c0_26, %c0_27] : memref<1x256x8xbf16, #tpu.memory_space<vmem>>, vector<1x256x8xbf16>
    %118 = vector.shape_cast %117 : vector<1x256x8xbf16> to vector<256x8xbf16>
    %119 = vector.shape_cast %116 : vector<256x8xbf16> to vector<1x256x8xbf16>
    tpu.vector_store %arg9[%c0_25, %c0_26, %c0_27], %119 {strides = array<i32>} : memref<1x256x8xbf16, #tpu.memory_space<vmem>>, vector<1x256x8xbf16>,
    return
  }
  func.func @transform_0(%arg0: i32, %arg1: i32) -> (i32, i32, i32, i32) {
    %c0_i32 = arith.constant 0 : i32
    %c0_i32_0 = arith.constant 0 : i32
    %c0_i32_1 = arith.constant 0 : i32
    return %arg0, %arg1, %c0_i32, %c0_i32_0 : i32, i32, i32, i32
  }
  func.func @transform_1(%arg0: i32, %arg1: i32) -> (i32, i32, i32, i32) {
    %c16_i32 = arith.constant 16 : i32
    %0 = arith.muli %arg1, %c16_i32 : i32
    %c1_i32 = arith.constant 1 : i32
    %1 = arith.subi %0, %c1_i32 : i32
    %c0_i32 = arith.constant 0 : i32
    %2 = arith.maxsi %1, %c0_i32 : i32
    %c0_i32_0 = arith.constant 0 : i32
    %c0_i32_1 = arith.constant 0 : i32
    %c0_i32_2 = arith.constant 0 : i32
    return %arg0, %2, %c0_i32_0, %c0_i32_1 : i32, i32, i32, i32
  }
  func.func @transform_2(%arg0: i32, %arg1: i32) -> (i32, i32, i32, i32) {
    %c1_i32 = arith.constant 1 : i32
    %0 = arith.addi %arg1, %c1_i32 : i32
    %c16_i32 = arith.constant 16 : i32
    %1 = arith.muli %0, %c16_i32 : i32
    %c15_i32 = arith.constant 15 : i32
    %2 = arith.minsi %1, %c15_i32 : i32
    %c0_i32 = arith.constant 0 : i32
    %c0_i32_0 = arith.constant 0 : i32
    %c0_i32_1 = arith.constant 0 : i32
    return %arg0, %2, %c0_i32, %c0_i32_0 : i32, i32, i32, i32
  }
  func.func @transform_3(%arg0: i32, %arg1: i32) -> (i32, i32, i32) {
    %c0_i32 = arith.constant 0 : i32
    %c0_i32_0 = arith.constant 0 : i32
    %c0_i32_1 = arith.constant 0 : i32
    %c0_i32_2 = arith.constant 0 : i32
    return %c0_i32, %c0_i32_0, %c0_i32_1 : i32, i32, i32
  }
  func.func @transform_4(%arg0: i32, %arg1: i32) -> (i32, i32) {
    %c0_i32 = arith.constant 0 : i32
    %c0_i32_0 = arith.constant 0 : i32
    %c0_i32_1 = arith.constant 0 : i32
    return %c0_i32, %c0_i32_0 : i32, i32
  }
  func.func @transform_5(%arg0: i32, %arg1: i32) -> (i32, i32) {
    %c0_i32 = arith.constant 0 : i32
    %c0_i32_0 = arith.constant 0 : i32
    %c0_i32_1 = arith.constant 0 : i32
    return %c0_i32, %c0_i32_0 : i32, i32
  }
  func.func @transform_6(%arg0: i32, %arg1: i32) -> (i32, i32) {
    %c0_i32 = arith.constant 0 : i32
    %c0_i32_0 = arith.constant 0 : i32
    %c0_i32_1 = arith.constant 0 : i32
    return %c0_i32, %c0_i32_0 : i32, i32
  }
  func.func @transform_7(%arg0: i32, %arg1: i32) -> (i32, i32, i32) {
    %c0_i32 = arith.constant 0 : i32
    %c0_i32_0 = arith.constant 0 : i32
    return %arg0, %arg1, %c0_i32 : i32, i32, i32
  }
}

</mosaic_0001>

<llo_original>
// kernel: depthwise_separable_conv.1
$region0: #{depthwise_separable_conv.1}
  #allocation0 [shape = 'u32[]', space=smem, size = 0x4, offset = 0x4, fixed_abs, tag = 'smem constant byte address 0x4 - core index']
  #allocation1 [shape = 'u32[144,128]{1,0:T(1,128)}', space=vmem, size = 0x12000, scoped, tag = 'internal scratch']
  %s0 = inlined_call_operand.vmem [shape: bf16[2,16,16,4], index: 0, kind: input, shape index: {}, may-alias: {0,1,2}]
  %s1 = inlined_call_operand.vmem [shape: bf16[2,16,16,4], index: 1, kind: input, shape index: {}, may-alias: {0,1,2}]
  %s2 = inlined_call_operand.vmem [shape: bf16[2,16,16,4], index: 2, kind: input, shape index: {}, may-alias: {0,1,2}]
  %s3 = inlined_call_operand.vmem [shape: f32[3,3,4], index: 3, kind: input, shape index: {}]
  %s4 = inlined_call_operand.vmem [shape: f32[1,4], index: 4, kind: input, shape index: {}]
  %s5 = inlined_call_operand.vmem [shape: bf16[4,8], index: 5, kind: input, shape index: {}]
  %s6 = inlined_call_operand.vmem [shape: f32[1,8], index: 6, kind: input, shape index: {}]
  %s7 = inlined_call_operand.vmem [shape: bf16[2,256,8], index: 7, kind: output, shape index: {}]
  %s8 = sld [smem:[#allocation0]]
  $region61: #{depthwise_separable_conv.1} parent=0
    _
  %s10 = ssub.s32 1, %s8
  %s11 = scalar_select 0, %s10, %s8
  loop: start=0, step=1, limit=4
  $region2: #{depthwise_separable_conv.1} parent=0 // loop_pre_header
    _
  $region3: #{depthwise_separable_conv.1} parent=0 // loop_header
    %s13 = sphi 0, %s17
    %p14 = scmp.ge.s32.totalorder %s13, 4
    %s20 = sphi 0, %s32
    %s21 = sphi 0, %s28
    %s22 = sphi 0, %s20
    %s23 = sphi 0, %s21
    %s24 = sphi 0, %s22
    %s25 = sphi 0, %s23
    %s37 = sphi 0, %s39
    %s40 = sphi 0, %s37
    %s41 = sphi 0, %s40
    %s57 = sphi 0, %s41
    %s73 = sphi 0, %s75
    %s76 = sphi 0, %s73
    %s77 = sphi 0, %s76
    %s93 = sphi 0, %s77
    %s109 = sphi 0, %s111
    %s112 = sphi 0, %s109
    %s113 = sphi 0, %s112
    %s129 = sphi 0, %s113
    %s133 = sphi 0, %s133
    %s135 = sphi 0, %s133
    %s136 = sphi 0, %s135
    %s150 = sphi 0, %s136
    %s154 = sphi 0, %s154
    %s156 = sphi 0, %s154
    %s157 = sphi 0, %s156
    %s171 = sphi 0, %s157
    %s175 = sphi 0, %s175
    %s177 = sphi 0, %s175
    %s178 = sphi 0, %s177
    %s192 = sphi 0, %s178
    %s196 = sphi 0, %s196
    %s198 = sphi 0, %s196
    %s199 = sphi 0, %s198
    %s213 = sphi 0, %s199
    %s221 = sphi 0, %s223
    %s224 = sphi 0, %s221
    %s225 = sphi 0, %s224
    %s241 = sphi 0, %s225
  $region4: #{depthwise_separable_conv.1} parent=0 // loop_header_branch
    %16 = sbr.rel (%p14) target = $region8
  $region5: #{depthwise_separable_conv.1} parent=0 // loop_body
    %s18 = ssub.s32 %s13, 1
    %s19 = ssub.s32 %s13, 2
    %s26 = sadd.s32 1, %s21
    %p27 = scmp.ge.s32.totalorder %s26, 1
    %s28 = scalar_select %p27, 0, %s26
    %s29 = sadd.s32 1, %s20
    %s30 = scalar_select %p27, %s29, %s20
    %p31 = scmp.ge.s32.totalorder %s30, 2
    %s32 = scalar_select %p31, 0, %s30
    %s33 = ssub.s32 %s20, %s32
    %s34 = ssub.s32 %s21, %s28
    %s35 = sor.u32 %s33, %s34
    %p36 = scmp.eq.s32.totalorder %s35, 0
    %s38 = sadd.s32 %s37, 1
    %s39 = scalar_select %p36, %s37, %s38
    %p42 = pneg %p36
    %p43 = scmp.eq.s32.totalorder %s13, 1
    %p44 = por %p42, %p43
    %p45 = scmp.ne.s32.totalorder %s37, %s40
    %p46 = scmp.eq.s32.totalorder %s13, 0
    %p47 = por %p45, %p46
    %p48 = scmp.ne.s32.totalorder %s37, %s40
    %p49 = scmp.eq.s32.totalorder %s18, 1
    %p50 = por %p48, %p49
    %p51 = scmp.ne.s32.totalorder %s40, %s41
    %p52 = scmp.eq.s32.totalorder %s18, 0
    %p53 = por %p51, %p52
    %p54 = scmp.ne.s32.totalorder %s40, %s41
    %p55 = scmp.eq.s32.totalorder %s19, 1
    %p56 = por %p54, %p55
    %p58 = scmp.ne.s32.totalorder %s41, %s57
    %p59 = scmp.eq.s32.totalorder %s19, 0
    %p60 = por %p58, %p59
    %s61 = smul.u32 %s21, 16
    %s62 = ssub.s32 %s61, 1
    %p63 = scmp.gt.s32.totalorder %s62, 0
    %s64 = scalar_select %p63, %s62, 0
    %s65 = smul.u32 %s28, 16
    %s66 = ssub.s32 %s65, 1
    %p67 = scmp.gt.s32.totalorder %s66, 0
    %s68 = scalar_select %p67, %s66, 0
    %s69 = ssub.s32 %s20, %s32
    %s70 = ssub.s32 %s64, %s68
    %s71 = sor.u32 %s69, %s70
    %p72 = scmp.eq.s32.totalorder %s71, 0
    %s74 = sadd.s32 %s73, 1
    %s75 = scalar_select %p72, %s73, %s74
    %p78 = pneg %p72
    %p79 = scmp.eq.s32.totalorder %s13, 1
    %p80 = por %p78, %p79
    %p81 = scmp.ne.s32.totalorder %s73, %s76
    %p82 = scmp.eq.s32.totalorder %s13, 0
    %p83 = por %p81, %p82
    %p84 = scmp.ne.s32.totalorder %s73, %s76
    %p85 = scmp.eq.s32.totalorder %s18, 1
    %p86 = por %p84, %p85
    %p87 = scmp.ne.s32.totalorder %s76, %s77
    %p88 = scmp.eq.s32.totalorder %s18, 0
    %p89 = por %p87, %p88
    %p90 = scmp.ne.s32.totalorder %s76, %s77
    %p91 = scmp.eq.s32.totalorder %s19, 1
    %p92 = por %p90, %p91
    %p94 = scmp.ne.s32.totalorder %s77, %s93
    %p95 = scmp.eq.s32.totalorder %s19, 0
    %p96 = por %p94, %p95
    %s97 = sadd.s32 %s21, 1
    %s98 = smul.u32 %s97, 16
    %p99 = scmp.lt.s32.totalorder %s98, 15
    %s100 = scalar_select %p99, %s98, 15
    %s101 = sadd.s32 %s28, 1
    %s102 = smul.u32 %s101, 16
    %p103 = scmp.lt.s32.totalorder %s102, 15
    %s104 = scalar_select %p103, %s102, 15
    %s105 = ssub.s32 %s20, %s32
    %s106 = ssub.s32 %s100, %s104
    %s107 = sor.u32 %s105, %s106
    %p108 = scmp.eq.s32.totalorder %s107, 0
    %s110 = sadd.s32 %s109, 1
    %s111 = scalar_select %p108, %s109, %s110
    %p114 = pneg %p108
    %p115 = scmp.eq.s32.totalorder %s13, 1
    %p116 = por %p114, %p115
    %p117 = scmp.ne.s32.totalorder %s109, %s112
    %p118 = scmp.eq.s32.totalorder %s13, 0
    %p119 = por %p117, %p118
    %p120 = scmp.ne.s32.totalorder %s109, %s112
    %p121 = scmp.eq.s32.totalorder %s18, 1
    %p122 = por %p120, %p121
    %p123 = scmp.ne.s32.totalorder %s112, %s113
    %p124 = scmp.eq.s32.totalorder %s18, 0
    %p125 = por %p123, %p124
    %p126 = scmp.ne.s32.totalorder %s112, %s113
    %p127 = scmp.eq.s32.totalorder %s19, 1
    %p128 = por %p126, %p127
    %p130 = scmp.ne.s32.totalorder %s113, %s129
    %p131 = scmp.eq.s32.totalorder %s19, 0
    %p132 = por %p130, %p131
    %s134 = sadd.s32 %s133, 1
    %p137 = scmp.eq.s32.totalorder %s13, 1
    %p138 = scmp.ne.s32.totalorder %s133, %s135
    %p139 = scmp.eq.s32.totalorder %s13, 0
    %p140 = por %p138, %p139
    %p141 = scmp.ne.s32.totalorder %s133, %s135
    %p142 = scmp.eq.s32.totalorder %s18, 1
    %p143 = por %p141, %p142
    %p144 = scmp.ne.s32.totalorder %s135, %s136
    %p145 = scmp.eq.s32.totalorder %s18, 0
    %p146 = por %p144, %p145
    %p147 = scmp.ne.s32.totalorder %s135, %s136
    %p148 = scmp.eq.s32.totalorder %s19, 1
    %p149 = por %p147, %p148
    %p151 = scmp.ne.s32.totalorder %s136, %s150
    %p152 = scmp.eq.s32.totalorder %s19, 0
    %p153 = por %p151, %p152
    %s155 = sadd.s32 %s154, 1
    %p158 = scmp.eq.s32.totalorder %s13, 1
    %p159 = scmp.ne.s32.totalorder %s154, %s156
    %p160 = scmp.eq.s32.totalorder %s13, 0
    %p161 = por %p159, %p160
    %p162 = scmp.ne.s32.totalorder %s154, %s156
    %p163 = scmp.eq.s32.totalorder %s18, 1
    %p164 = por %p162, %p163
    %p165 = scmp.ne.s32.totalorder %s156, %s157
    %p166 = scmp.eq.s32.totalorder %s18, 0
    %p167 = por %p165, %p166
    %p168 = scmp.ne.s32.totalorder %s156, %s157
    %p169 = scmp.eq.s32.totalorder %s19, 1
    %p170 = por %p168, %p169
    %p172 = scmp.ne.s32.totalorder %s157, %s171
    %p173 = scmp.eq.s32.totalorder %s19, 0
    %p174 = por %p172, %p173
    %s176 = sadd.s32 %s175, 1
    %p179 = scmp.eq.s32.totalorder %s13, 1
    %p180 = scmp.ne.s32.totalorder %s175, %s177
    %p181 = scmp.eq.s32.totalorder %s13, 0
    %p182 = por %p180, %p181
    %p183 = scmp.ne.s32.totalorder %s175, %s177
    %p184 = scmp.eq.s32.totalorder %s18, 1
    %p185 = por %p183, %p184
    %p186 = scmp.ne.s32.totalorder %s177, %s178
    %p187 = scmp.eq.s32.totalorder %s18, 0
    %p188 = por %p186, %p187
    %p189 = scmp.ne.s32.totalorder %s177, %s178
    %p190 = scmp.eq.s32.totalorder %s19, 1
    %p191 = por %p189, %p190
    %p193 = scmp.ne.s32.totalorder %s178, %s192
    %p194 = scmp.eq.s32.totalorder %s19, 0
    %p195 = por %p193, %p194
    %s197 = sadd.s32 %s196, 1
    %p200 = scmp.eq.s32.totalorder %s13, 1
    %p201 = scmp.ne.s32.totalorder %s196, %s198
    %p202 = scmp.eq.s32.totalorder %s13, 0
    %p203 = por %p201, %p202
    %p204 = scmp.ne.s32.totalorder %s196, %s198
    %p205 = scmp.eq.s32.totalorder %s18, 1
    %p206 = por %p204, %p205
    %p207 = scmp.ne.s32.totalorder %s198, %s199
    %p208 = scmp.eq.s32.totalorder %s18, 0
    %p209 = por %p207, %p208
    %p210 = scmp.ne.s32.totalorder %s198, %s199
    %p211 = scmp.eq.s32.totalorder %s19, 1
    %p212 = por %p210, %p211
    %p214 = scmp.ne.s32.totalorder %s199, %s213
    %p215 = scmp.eq.s32.totalorder %s19, 0
    %p216 = por %p214, %p215
    %s217 = ssub.s32 %s20, %s32
    %s218 = ssub.s32 %s21, %s28
    %s219 = sor.u32 %s217, %s218
    %p220 = scmp.eq.s32.totalorder %s219, 0
    %s222 = sadd.s32 %s221, 1
    %s223 = scalar_select %p220, %s221, %s222
    %p226 = pneg %p220
    %p227 = scmp.eq.s32.totalorder %s13, 1
    %p228 = por %p226, %p227
    %p229 = scmp.ne.s32.totalorder %s221, %s224
    %p230 = scmp.eq.s32.totalorder %s13, 0
    %p231 = por %p229, %p230
    %p232 = scmp.ne.s32.totalorder %s221, %s224
    %p233 = scmp.eq.s32.totalorder %s18, 1
    %p234 = por %p232, %p233
    %p235 = scmp.ne.s32.totalorder %s224, %s225
    %p236 = scmp.eq.s32.totalorder %s18, 0
    %p237 = por %p235, %p236
    %p238 = scmp.ne.s32.totalorder %s224, %s225
    %p239 = scmp.eq.s32.totalorder %s19, 1
    %p240 = por %p238, %p239
    %p242 = scmp.ne.s32.totalorder %s225, %s241
    %p243 = scmp.eq.s32.totalorder %s19, 0
    %p244 = por %p242, %p243
    %p245 = scmp.le.s32.totalorder 1, %s13
    %p246 = scmp.lt.s32.totalorder %s13, 3
    %p247 = pnand %p245, %p246
    %p248 = pneg %p247
    // Predicated region
    $region9: #{depthwise_separable_conv.1} parent=5 // pred_check
      _
    $region10: #{depthwise_separable_conv.1} parent=5 // pred_check_branch
      %250 = sbr.rel (%p247) target = $region12
    $region11: #{depthwise_separable_conv.1} parent=5 // pred_region
      %s251 = ssub.s32 %s13, 1
      // Predicated region
      $region13: #{depthwise_separable_conv.1} parent=11 // pred_check
        %p252 = pneg %p146
      $region14: #{depthwise_separable_conv.1} parent=11 // pred_check_branch
        %254 = sbr.rel (%p252) target = $region16
      $region15: #{depthwise_separable_conv.1} parent=11 // pred_region
        _
      $region16: #{depthwise_separable_conv.1} parent=11 // pred_fallthru
        _
      // Predicated region
      $region17: #{depthwise_separable_conv.1} parent=11 // pred_check
        %p255 = pneg %p167
      $region18: #{depthwise_separable_conv.1} parent=11 // pred_check_branch
        %257 = sbr.rel (%p255) target = $region20
      $region19: #{depthwise_separable_conv.1} parent=11 // pred_region
        _
      $region20: #{depthwise_separable_conv.1} parent=11 // pred_fallthru
        _
      // Predicated region
      $region21: #{depthwise_separable_conv.1} parent=11 // pred_check
        %p258 = pneg %p188
      $region22: #{depthwise_separable_conv.1} parent=11 // pred_check_branch
        %260 = sbr.rel (%p258) target = $region24
      $region23: #{depthwise_separable_conv.1} parent=11 // pred_region
        _
      $region24: #{depthwise_separable_conv.1} parent=11 // pred_fallthru
        _
      // Predicated region
      $region25: #{depthwise_separable_conv.1} parent=11 // pred_check
        %p261 = pneg %p209
      $region26: #{depthwise_separable_conv.1} parent=11 // pred_check_branch
        %263 = sbr.rel (%p261) target = $region28
      $region27: #{depthwise_separable_conv.1} parent=11 // pred_region
        _
      $region28: #{depthwise_separable_conv.1} parent=11 // pred_fallthru
        _
    $region12: #{depthwise_separable_conv.1} parent=5 // pred_fallthru
      _
    %p264 = scmp.lt.s32.totalorder %s13, 2
    // Predicated region
    $region29: #{depthwise_separable_conv.1} parent=5 // pred_check
      %p265 = pneg %p264
    $region30: #{depthwise_separable_conv.1} parent=5 // pred_check_branch
      %267 = sbr.rel (%p265) target = $region32
    $region31: #{depthwise_separable_conv.1} parent=5 // pred_region
      // Predicated region
      $region33: #{depthwise_separable_conv.1} parent=31 // pred_check
        %p268 = pneg %p47
      $region34: #{depthwise_separable_conv.1} parent=31 // pred_check_branch
        %270 = sbr.rel (%p268) target = $region36
      $region35: #{depthwise_separable_conv.1} parent=31 // pred_region
        %s271 = smul.u32 16, %s21
        %p272 = scmp.lt.s32.totalorder %s20, 1
        %s273 = scalar_select %p272, %s20, 1
        %p274 = scmp.lt.s32.totalorder %s271, 15
        %s275 = scalar_select %p274, %s271, 15
        %s276 = smul.addr %s275, 2
        %s277 = smul.addr %s273, 32
        %s278 = sadd.s32 %s276, %s277
        %s279 = smul.addr %s278, 4
        %s280 = scalar_lea.vmem %s0, %s279
        %s281 = smul.u32 16, %s21
      $region36: #{depthwise_separable_conv.1} parent=31 // pred_fallthru
        _
      // Predicated region
      $region37: #{depthwise_separable_conv.1} parent=31 // pred_check
        %p282 = pneg %p83
      $region38: #{depthwise_separable_conv.1} parent=31 // pred_check_branch
        %284 = sbr.rel (%p282) target = $region40
      $region39: #{depthwise_separable_conv.1} parent=31 // pred_region
        %s285 = smul.u32 %s21, 16
        %s286 = ssub.s32 %s285, 1
        %p287 = scmp.gt.s32.totalorder %s286, 0
        %s288 = scalar_select %p287, %s286, 0
        %p289 = scmp.lt.s32.totalorder %s20, 1
        %s290 = scalar_select %p289, %s20, 1
        %p291 = scmp.lt.s32.totalorder %s288, 15
        %s292 = scalar_select %p291, %s288, 15
        %s293 = smul.addr %s292, 2
        %s294 = smul.addr %s290, 32
        %s295 = sadd.s32 %s293, %s294
        %s296 = smul.addr %s295, 4
        %s297 = scalar_lea.vmem %s1, %s296
        %s298 = smul.u32 %s21, 16
        %s299 = ssub.s32 %s298, 1
        %p300 = scmp.gt.s32.totalorder %s299, 0
        %s301 = scalar_select %p300, %s299, 0
      $region40: #{depthwise_separable_conv.1} parent=31 // pred_fallthru
        _
      // Predicated region
      $region41: #{depthwise_separable_conv.1} parent=31 // pred_check
        %p302 = pneg %p119
      $region42: #{depthwise_separable_conv.1} parent=31 // pred_check_branch
        %304 = sbr.rel (%p302) target = $region44
      $region43: #{depthwise_separable_conv.1} parent=31 // pred_region
        %s305 = sadd.s32 %s21, 1
        %s306 = smul.u32 %s305, 16
        %p307 = scmp.lt.s32.totalorder %s306, 15
        %s308 = scalar_select %p307, %s306, 15
        %p309 = scmp.lt.s32.totalorder %s20, 1
        %s310 = scalar_select %p309, %s20, 1
        %p311 = scmp.lt.s32.totalorder %s308, 15
        %s312 = scalar_select %p311, %s308, 15
        %s313 = smul.addr %s312, 2
        %s314 = smul.addr %s310, 32
        %s315 = sadd.s32 %s313, %s314
        %s316 = smul.addr %s315, 4
        %s317 = scalar_lea.vmem %s2, %s316
        %s318 = sadd.s32 %s21, 1
        %s319 = smul.u32 %s318, 16
        %p320 = scmp.lt.s32.totalorder %s319, 15
        %s321 = scalar_select %p320, %s319, 15
      $region44: #{depthwise_separable_conv.1} parent=31 // pred_fallthru
        _
    $region32: #{depthwise_separable_conv.1} parent=5 // pred_fallthru
      _
    %p322 = scmp.le.s32.totalorder 1, %s13
    %p323 = scmp.lt.s32.totalorder %s13, 3
    %p324 = pnand %p322, %p323
    %p325 = pneg %p324
    // Predicated region
    $region45: #{depthwise_separable_conv.1} parent=5 // pred_check
      _
    $region46: #{depthwise_separable_conv.1} parent=5 // pred_check_branch
      %327 = sbr.rel (%p324) target = $region48
    $region47: #{depthwise_separable_conv.1} parent=5 // pred_region
      %s328 = ssub.s32 %s13, 1
      %s329 = smul.u32 16, %s23
      %p330 = scmp.lt.s32.totalorder %s22, 1
      %s331 = scalar_select %p330, %s22, 1
      %p332 = scmp.lt.s32.totalorder %s329, 15
      %s333 = scalar_select %p332, %s329, 15
      %s334 = smul.addr %s333, 2
      %s335 = smul.addr %s331, 32
      %s336 = sadd.s32 %s334, %s335
      %s337 = smul.addr %s336, 4
      %s338 = scalar_lea.vmem %s0, %s337
      %p339 = pneg %p53
      %p340 = pneg %p50
      %s341 = smul.u32 %s23, 16
      %s342 = ssub.s32 %s341, 1
      %p343 = scmp.gt.s32.totalorder %s342, 0
      %s344 = scalar_select %p343, %s342, 0
      %p345 = scmp.lt.s32.totalorder %s22, 1
      %s346 = scalar_select %p345, %s22, 1
      %p347 = scmp.lt.s32.totalorder %s344, 15
      %s348 = scalar_select %p347, %s344, 15
      %s349 = smul.addr %s348, 2
      %s350 = smul.addr %s346, 32
      %s351 = sadd.s32 %s349, %s350
      %s352 = smul.addr %s351, 4
      %s353 = scalar_lea.vmem %s1, %s352
      %p354 = pneg %p89
      %p355 = pneg %p86
      %s356 = sadd.s32 %s23, 1
      %s357 = smul.u32 %s356, 16
      %p358 = scmp.lt.s32.totalorder %s357, 15
      %s359 = scalar_select %p358, %s357, 15
      %p360 = scmp.lt.s32.totalorder %s22, 1
      %s361 = scalar_select %p360, %s22, 1
      %p362 = scmp.lt.s32.totalorder %s359, 15
      %s363 = scalar_select %p362, %s359, 15
      %s364 = smul.addr %s363, 2
      %s365 = smul.addr %s361, 32
      %s366 = sadd.s32 %s364, %s365
      %s367 = smul.addr %s366, 4
      %s368 = scalar_lea.vmem %s2, %s367
      %p369 = pneg %p125
      %p370 = pneg %p122
      %p371 = pneg %p146
      %p372 = pneg %p143
      %p373 = pneg %p167
      %p374 = pneg %p164
      %p375 = pneg %p188
      %p376 = pneg %p185
      %p377 = pneg %p209
      %p378 = pneg %p206
      %p379 = pneg %p237
      %p380 = pneg %p234
      %s381 = smul.u32 32, %s23
      %p382 = scmp.lt.s32.totalorder %s22, 1
      %s383 = scalar_select %p382, %s22, 1
      %p384 = scmp.lt.s32.totalorder %s381, 31
      %s385 = scalar_select %p384, %s381, 31
      %s386 = smul.addr %s383, 32
      %s387 = sadd.s32 %s385, %s386
      %s388 = smul.addr %s387, 4
      %s389 = scalar_lea.vmem %s7, %s388
      %s390 = smul.u32 16, %s23
      %p391 = scmp.lt.s32.totalorder %s22, 1
      %s392 = scalar_select %p391, %s22, 1
      %p393 = scmp.lt.s32.totalorder %s390, 15
      %s394 = scalar_select %p393, %s390, 15
      %s395 = smul.addr %s394, 2
      %s396 = smul.addr %s392, 32
      %s397 = sadd.s32 %s395, %s396
      %s398 = smul.addr %s397, 4
      %s399 = scalar_lea.vmem %s0, %s398
      %s400 = smul.u32 16, %s23
      %s401 = smul.u32 %s23, 16
      %s402 = ssub.s32 %s401, 1
      %p403 = scmp.gt.s32.totalorder %s402, 0
      %s404 = scalar_select %p403, %s402, 0
      %p405 = scmp.lt.s32.totalorder %s22, 1
      %s406 = scalar_select %p405, %s22, 1
      %p407 = scmp.lt.s32.totalorder %s404, 15
      %s408 = scalar_select %p407, %s404, 15
      %s409 = smul.addr %s408, 2
      %s410 = smul.addr %s406, 32
      %s411 = sadd.s32 %s409, %s410
      %s412 = smul.addr %s411, 4
      %s413 = scalar_lea.vmem %s1, %s412
      %s414 = smul.u32 %s23, 16
      %s415 = ssub.s32 %s414, 1
      %p416 = scmp.gt.s32.totalorder %s415, 0
      %s417 = scalar_select %p416, %s415, 0
      %s418 = sadd.s32 %s23, 1
      %s419 = smul.u32 %s418, 16
      %p420 = scmp.lt.s32.totalorder %s419, 15
      %s421 = scalar_select %p420, %s419, 15
      %p422 = scmp.lt.s32.totalorder %s22, 1
      %s423 = scalar_select %p422, %s22, 1
      %p424 = scmp.lt.s32.totalorder %s421, 15
      %s425 = scalar_select %p424, %s421, 15
      %s426 = smul.addr %s425, 2
      %s427 = smul.addr %s423, 32
      %s428 = sadd.s32 %s426, %s427
      %s429 = smul.addr %s428, 4
      %s430 = scalar_lea.vmem %s2, %s429
      %s431 = sadd.s32 %s23, 1
      %s432 = smul.u32 %s431, 16
      %p433 = scmp.lt.s32.totalorder %s432, 15
      %s434 = scalar_select %p433, %s432, 15
      %s435 = smul.u32 32, %s23
      %p436 = scmp.lt.s32.totalorder %s22, 1
      %s437 = scalar_select %p436, %s22, 1
      %p438 = scmp.lt.s32.totalorder %s435, 31
      %s439 = scalar_select %p438, %s435, 31
      %s440 = smul.addr %s437, 32
      %s441 = sadd.s32 %s439, %s440
      %s442 = smul.addr %s441, 4
      %s443 = scalar_lea.vmem %s7, %s442
      %s444 = smul.u32 32, %s23
      %v446 = vld [vmem:[%s399] sm:$0xf]
      %v447 = vld [vmem:[%s399 + $0x4] sm:$0xf]
      %v448 = vld [vmem:[%s399 + $0x8] sm:$0xf]
      %v449 = vld [vmem:[%s399 + $0xc] sm:$0xf]
      %v450 = vld [vmem:[%s399 + $0x10] sm:$0xf]
      %v451 = vld [vmem:[%s399 + $0x14] sm:$0xf]
      %v452 = vld [vmem:[%s399 + $0x18] sm:$0xf]
      %v453 = vld [vmem:[%s399 + $0x1c] sm:$0xf]
      %v454 = vld [vmem:[%s399 + $0x20] sm:$0xf]
      %v455 = vld [vmem:[%s399 + $0x24] sm:$0xf]
      %v456 = vld [vmem:[%s399 + $0x28] sm:$0xf]
      %v457 = vld [vmem:[%s399 + $0x2c] sm:$0xf]
      %v458 = vld [vmem:[%s399 + $0x30] sm:$0xf]
      %v459 = vld [vmem:[%s399 + $0x34] sm:$0xf]
      %v460 = vld [vmem:[%s399 + $0x38] sm:$0xf]
      %v461 = vld [vmem:[%s399 + $0x3c] sm:$0xf]
      %v462 = vld [vmem:[%s399 + $0x40] sm:$0xf]
      %v463 = vld [vmem:[%s399 + $0x44] sm:$0xf]
      %v464 = vld [vmem:[%s399 + $0x48] sm:$0xf]
      %v465 = vld [vmem:[%s399 + $0x4c] sm:$0xf]
      %v466 = vld [vmem:[%s399 + $0x50] sm:$0xf]
      %v467 = vld [vmem:[%s399 + $0x54] sm:$0xf]
      %v468 = vld [vmem:[%s399 + $0x58] sm:$0xf]
      %v469 = vld [vmem:[%s399 + $0x5c] sm:$0xf]
      %v470 = vld [vmem:[%s399 + $0x60] sm:$0xf]
      %v471 = vld [vmem:[%s399 + $0x64] sm:$0xf]
      %v472 = vld [vmem:[%s399 + $0x68] sm:$0xf]
      %v473 = vld [vmem:[%s399 + $0x6c] sm:$0xf]
      %v474 = vld [vmem:[%s399 + $0x70] sm:$0xf]
      %v475 = vld [vmem:[%s399 + $0x74] sm:$0xf]
      %v476 = vld [vmem:[%s399 + $0x78] sm:$0xf]
      %v477 = vld [vmem:[%s399 + $0x7c] sm:$0xf]
      %v478 = vunpack.c.l.bf16 %v446
      %v479 = vunpack.c.l.bf16 %v447
      %v480 = vunpack.c.l.bf16 %v448
      %v481 = vunpack.c.l.bf16 %v449
      %v482 = vunpack.c.l.bf16 %v450
      %v483 = vunpack.c.l.bf16 %v451
      %v484 = vunpack.c.l.bf16 %v452
      %v485 = vunpack.c.l.bf16 %v453
      %v486 = vunpack.c.l.bf16 %v454
      %v487 = vunpack.c.l.bf16 %v455
      %v488 = vunpack.c.l.bf16 %v456
      %v489 = vunpack.c.l.bf16 %v457
      %v490 = vunpack.c.l.bf16 %v458
      %v491 = vunpack.c.l.bf16 %v459
      %v492 = vunpack.c.l.bf16 %v460
      %v493 = vunpack.c.l.bf16 %v461
      %v494 = vunpack.c.l.bf16 %v462
      %v495 = vunpack.c.l.bf16 %v463
      %v496 = vunpack.c.l.bf16 %v464
      %v497 = vunpack.c.l.bf16 %v465
      %v498 = vunpack.c.l.bf16 %v466
      %v499 = vunpack.c.l.bf16 %v467
      %v500 = vunpack.c.l.bf16 %v468
      %v501 = vunpack.c.l.bf16 %v469
      %v502 = vunpack.c.l.bf16 %v470
      %v503 = vunpack.c.l.bf16 %v471
      %v504 = vunpack.c.l.bf16 %v472
      %v505 = vunpack.c.l.bf16 %v473
      %v506 = vunpack.c.l.bf16 %v474
      %v507 = vunpack.c.l.bf16 %v475
      %v508 = vunpack.c.l.bf16 %v476
      %v509 = vunpack.c.l.bf16 %v477
      %v510 = vld [vmem:[%s413] sm:$0xf]
      %v511 = vld [vmem:[%s413 + $0x4] sm:$0xf]
      %v512 = vunpack.c.l.bf16 %v510
      %v513 = vunpack.c.l.bf16 %v511
      %p514 = scmp.gt.s32.totalorder %s23, 0
      %s515 = scalar_select %p514, 1, 0
      %s516 = scvt.s32.f32 %s515
      %v517 = vstv %s516
      %v518 = vmul.f32 %v512, %v517
      %v519 = vmul.f32 %v513, %v517
      %v520 = vld [vmem:[%s430] sm:$0xf]
      %v521 = vld [vmem:[%s430 + $0x4] sm:$0xf]
      %v522 = vunpack.c.l.bf16 %v520
      %v523 = vunpack.c.l.bf16 %v521
      %p524 = scmp.lt.s32.totalorder %s23, 0
      %s525 = scalar_select %p524, 1, 0
      %s526 = scvt.s32.f32 %s525
      %v527 = vstv %s526
      %v528 = vmul.f32 %v522, %v527
      %v529 = vmul.f32 %v523, %v527
      %v530 = vlaneseq
      %v531 = vshrl.u32 %v530, 7
      %v532 = vadd.s32 %v531, 8
      %vm533 = vcmp.gt.s32.totalorder %v531, 0
      %vm534 = vcmp.gt.s32.totalorder %v532, 0
      %v535 = vsel %vm533, 1, 0
      %v536 = vsel %vm534, 1, 0
      %v537 = vcvt.s32.f32 %v535
      %v538 = vcvt.s32.f32 %v536
      %vm539 = vcmp.lt.s32.totalorder %v531, 15
      %vm540 = vcmp.lt.s32.totalorder %v532, 15
      %v541 = vsel %vm539, 1, 0
      %v542 = vsel %vm540, 1, 0
      %v543 = vcvt.s32.f32 %v541
      %v544 = vcvt.s32.f32 %v542
      %v545 = vrot.slane %v518, 7
      %v546 = vrot.slane %v478, 7
      %v547 = vrot.slane %v480, 7
      %v548 = vrot.slane %v482, 7
      %v549 = vrot.slane %v484, 7
      %v550 = vrot.slane %v486, 7
      %v551 = vrot.slane %v488, 7
      %v552 = vrot.slane %v490, 7
      %v553 = vrot.slane %v492, 7
      %v554 = vrot.slane %v494, 7
      %v555 = vrot.slane %v496, 7
      %v556 = vrot.slane %v498, 7
      %v557 = vrot.slane %v500, 7
      %v558 = vrot.slane %v502, 7
      %v559 = vrot.slane %v504, 7
      %v560 = vrot.slane %v506, 7
      %v561 = vrot.slane %v508, 7
      %v562 = vrot.slane %v528, 7
      %v563 = vrot.slane %v519, 7
      %v564 = vrot.slane %v479, 7
      %v565 = vrot.slane %v481, 7
      %v566 = vrot.slane %v483, 7
      %v567 = vrot.slane %v485, 7
      %v568 = vrot.slane %v487, 7
      %v569 = vrot.slane %v489, 7
      %v570 = vrot.slane %v491, 7
      %v571 = vrot.slane %v493, 7
      %v572 = vrot.slane %v495, 7
      %v573 = vrot.slane %v497, 7
      %v574 = vrot.slane %v499, 7
      %v575 = vrot.slane %v501, 7
      %v576 = vrot.slane %v503, 7
      %v577 = vrot.slane %v505, 7
      %v578 = vrot.slane %v507, 7
      %v579 = vrot.slane %v509, 7
      %v580 = vrot.slane %v529, 7
      %vm581 = vcmp.lt.s32.totalorder %v531, 1
      %v582 = vsel %vm581, %v545, %v563
      %v583 = vsel %vm581, %v546, %v564
      %v584 = vsel %vm581, %v547, %v565
      %v585 = vsel %vm581, %v548, %v566
      %v586 = vsel %vm581, %v549, %v567
      %v587 = vsel %vm581, %v550, %v568
      %v588 = vsel %vm581, %v551, %v569
      %v589 = vsel %vm581, %v552, %v570
      %v590 = vsel %vm581, %v553, %v571
      %v591 = vsel %vm581, %v554, %v572
      %v592 = vsel %vm581, %v555, %v573
      %v593 = vsel %vm581, %v556, %v574
      %v594 = vsel %vm581, %v557, %v575
      %v595 = vsel %vm581, %v558, %v576
      %v596 = vsel %vm581, %v559, %v577
      %v597 = vsel %vm581, %v560, %v578
      %v598 = vsel %vm581, %v561, %v579
      %v599 = vsel %vm581, %v562, %v580
      %v600 = vsel %vm581, %v563, %v545
      %v601 = vsel %vm581, %v564, %v546
      %v602 = vsel %vm581, %v565, %v547
      %v603 = vsel %vm581, %v566, %v548
      %v604 = vsel %vm581, %v567, %v549
      %v605 = vsel %vm581, %v568, %v550
      %v606 = vsel %vm581, %v569, %v551
      %v607 = vsel %vm581, %v570, %v552
      %v608 = vsel %vm581, %v571, %v553
      %v609 = vsel %vm581, %v572, %v554
      %v610 = vsel %vm581, %v573, %v555
      %v611 = vsel %vm581, %v574, %v556
      %v612 = vsel %vm581, %v575, %v557
      %v613 = vsel %vm581, %v576, %v558
      %v614 = vsel %vm581, %v577, %v559
      %v615 = vsel %vm581, %v578, %v560
      %v616 = vsel %vm581, %v579, %v561
      %v617 = vsel %vm581, %v580, %v562
      %v618 = vmul.f32 %v600, %v537
      %v619 = vmul.f32 %v582, %v538
      %v620 = vmul.f32 %v601, %v537
      %v621 = vmul.f32 %v583, %v538
      %v622 = vmul.f32 %v602, %v537
      %v623 = vmul.f32 %v584, %v538
      %v624 = vmul.f32 %v603, %v537
      %v625 = vmul.f32 %v585, %v538
      %v626 = vmul.f32 %v604, %v537
      %v627 = vmul.f32 %v586, %v538
      %v628 = vmul.f32 %v605, %v537
      %v629 = vmul.f32 %v587, %v538
      %v630 = vmul.f32 %v606, %v537
      %v631 = vmul.f32 %v588, %v538
      %v632 = vmul.f32 %v607, %v537
      %v633 = vmul.f32 %v589, %v538
      %v634 = vmul.f32 %v608, %v537
      %v635 = vmul.f32 %v590, %v538
      %v636 = vmul.f32 %v609, %v537
      %v637 = vmul.f32 %v591, %v538
      %v638 = vmul.f32 %v610, %v537
      %v639 = vmul.f32 %v592, %v538
      %v640 = vmul.f32 %v611, %v537
      %v641 = vmul.f32 %v593, %v538
      %v642 = vmul.f32 %v612, %v537
      %v643 = vmul.f32 %v594, %v538
      %v644 = vmul.f32 %v613, %v537
      %v645 = vmul.f32 %v595, %v538
      %v646 = vmul.f32 %v614, %v537
      %v647 = vmul.f32 %v596, %v538
      %v648 = vmul.f32 %v615, %v537
      %v649 = vmul.f32 %v597, %v538
      %v650 = vmul.f32 %v616, %v537
      %v651 = vmul.f32 %v598, %v538
      %v652 = vmul.f32 %v617, %v537
      %v653 = vmul.f32 %v599, %v538
      %v654 = vrot.slane %v518, 1
      %v655 = vrot.slane %v478, 1
      %v656 = vrot.slane %v480, 1
      %v657 = vrot.slane %v482, 1
      %v658 = vrot.slane %v484, 1
      %v659 = vrot.slane %v486, 1
      %v660 = vrot.slane %v488, 1
      %v661 = vrot.slane %v490, 1
      %v662 = vrot.slane %v492, 1
      %v663 = vrot.slane %v494, 1
      %v664 = vrot.slane %v496, 1
      %v665 = vrot.slane %v498, 1
      %v666 = vrot.slane %v500, 1
      %v667 = vrot.slane %v502, 1
      %v668 = vrot.slane %v504, 1
      %v669 = vrot.slane %v506, 1
      %v670 = vrot.slane %v508, 1
      %v671 = vrot.slane %v528, 1
      %v672 = vrot.slane %v519, 1
      %v673 = vrot.slane %v479, 1
      %v674 = vrot.slane %v481, 1
      %v675 = vrot.slane %v483, 1
      %v676 = vrot.slane %v485, 1
      %v677 = vrot.slane %v487, 1
      %v678 = vrot.slane %v489, 1
      %v679 = vrot.slane %v491, 1
      %v680 = vrot.slane %v493, 1
      %v681 = vrot.slane %v495, 1
      %v682 = vrot.slane %v497, 1
      %v683 = vrot.slane %v499, 1
      %v684 = vrot.slane %v501, 1
      %v685 = vrot.slane %v503, 1
      %v686 = vrot.slane %v505, 1
      %v687 = vrot.slane %v507, 1
      %v688 = vrot.slane %v509, 1
      %v689 = vrot.slane %v529, 1
      %vm690 = vcmp.lt.s32.totalorder %v531, 7
      %v691 = vsel %vm690, %v654, %v672
      %v692 = vsel %vm690, %v655, %v673
      %v693 = vsel %vm690, %v656, %v674
      %v694 = vsel %vm690, %v657, %v675
      %v695 = vsel %vm690, %v658, %v676
      %v696 = vsel %vm690, %v659, %v677
      %v697 = vsel %vm690, %v660, %v678
      %v698 = vsel %vm690, %v661, %v679
      %v699 = vsel %vm690, %v662, %v680
      %v700 = vsel %vm690, %v663, %v681
      %v701 = vsel %vm690, %v664, %v682
      %v702 = vsel %vm690, %v665, %v683
      %v703 = vsel %vm690, %v666, %v684
      %v704 = vsel %vm690, %v667, %v685
      %v705 = vsel %vm690, %v668, %v686
      %v706 = vsel %vm690, %v669, %v687
      %v707 = vsel %vm690, %v670, %v688
      %v708 = vsel %vm690, %v671, %v689
      %v709 = vsel %vm690, %v672, %v654
      %v710 = vsel %vm690, %v673, %v655
      %v711 = vsel %vm690, %v674, %v656
      %v712 = vsel %vm690, %v675, %v657
      %v713 = vsel %vm690, %v676, %v658
      %v714 = vsel %vm690, %v677, %v659
      %v715 = vsel %vm690, %v678, %v660
      %v716 = vsel %vm690, %v679, %v661
      %v717 = vsel %vm690, %v680, %v662
      %v718 = vsel %vm690, %v681, %v663
      %v719 = vsel %vm690, %v682, %v664
      %v720 = vsel %vm690, %v683, %v665
      %v721 = vsel %vm690, %v684, %v666
      %v722 = vsel %vm690, %v685, %v667
      %v723 = vsel %vm690, %v686, %v668
      %v724 = vsel %vm690, %v687, %v669
      %v725 = vsel %vm690, %v688, %v670
      %v726 = vsel %vm690, %v689, %v671
      %v727 = vmul.f32 %v691, %v543
      %v728 = vmul.f32 %v709, %v544
      %v729 = vmul.f32 %v692, %v543
      %v730 = vmul.f32 %v710, %v544
      %v731 = vmul.f32 %v693, %v543
      %v732 = vmul.f32 %v711, %v544
      %v733 = vmul.f32 %v694, %v543
      %v734 = vmul.f32 %v712, %v544
      %v735 = vmul.f32 %v695, %v543
      %v736 = vmul.f32 %v713, %v544
      %v737 = vmul.f32 %v696, %v543
      %v738 = vmul.f32 %v714, %v544
      %v739 = vmul.f32 %v697, %v543
      %v740 = vmul.f32 %v715, %v544
      %v741 = vmul.f32 %v698, %v543
      %v742 = vmul.f32 %v716, %v544
      %v743 = vmul.f32 %v699, %v543
      %v744 = vmul.f32 %v717, %v544
      %v745 = vmul.f32 %v700, %v543
      %v746 = vmul.f32 %v718, %v544
      %v747 = vmul.f32 %v701, %v543
      %v748 = vmul.f32 %v719, %v544
      %v749 = vmul.f32 %v702, %v543
      %v750 = vmul.f32 %v720, %v544
      %v751 = vmul.f32 %v703, %v543
      %v752 = vmul.f32 %v721, %v544
      %v753 = vmul.f32 %v704, %v543
      %v754 = vmul.f32 %v722, %v544
      %v755 = vmul.f32 %v705, %v543
      %v756 = vmul.f32 %v723, %v544
      %v757 = vmul.f32 %v706, %v543
      %v758 = vmul.f32 %v724, %v544
      %v759 = vmul.f32 %v707, %v543
      %v760 = vmul.f32 %v725, %v544
      %v761 = vmul.f32 %v708, %v543
      %v762 = vmul.f32 %v726, %v544
      %v763 = vld [vmem:[%s3] sm:$0x7]
      %v764 = vld [vmem:[%s3 + $0x4] sm:$0x7]
      %v765 = vld [vmem:[%s3 + $0x8] sm:$0x7]
      %v766 = vlaneseq
      %v767 = vshrl.u32 %v766, 7
      %v768 = vsub.s32 0, %v767
      %v769 = vrot.slane %v763, %v768
      %v770 = vmul.f32 %v618, %v769
      %v771 = vmul.f32 %v619, %v769
      %v772 = vmul.f32 %v620, %v769
      %v773 = vmul.f32 %v621, %v769
      %v774 = vmul.f32 %v622, %v769
      %v775 = vmul.f32 %v623, %v769
      %v776 = vmul.f32 %v624, %v769
      %v777 = vmul.f32 %v625, %v769
      %v778 = vmul.f32 %v626, %v769
      %v779 = vmul.f32 %v627, %v769
      %v780 = vmul.f32 %v628, %v769
      %v781 = vmul.f32 %v629, %v769
      %v782 = vmul.f32 %v630, %v769
      %v783 = vmul.f32 %v631, %v769
      %v784 = vmul.f32 %v632, %v769
      %v785 = vmul.f32 %v633, %v769
      %v786 = vmul.f32 %v634, %v769
      %v787 = vmul.f32 %v635, %v769
      %v788 = vmul.f32 %v636, %v769
      %v789 = vmul.f32 %v637, %v769
      %v790 = vmul.f32 %v638, %v769
      %v791 = vmul.f32 %v639, %v769
      %v792 = vmul.f32 %v640, %v769
      %v793 = vmul.f32 %v641, %v769
      %v794 = vmul.f32 %v642, %v769
      %v795 = vmul.f32 %v643, %v769
      %v796 = vmul.f32 %v644, %v769
      %v797 = vmul.f32 %v645, %v769
      %v798 = vmul.f32 %v646, %v769
      %v799 = vmul.f32 %v647, %v769
      %v800 = vmul.f32 %v648, %v769
      %v801 = vmul.f32 %v649, %v769
      %v802 = vlaneseq
      %v803 = vshrl.u32 %v802, 7
      %v804 = vsub.s32 0, %v803
      %v805 = vrot.slane %v764, %v804
      %v806 = vmul.f32 %v620, %v805
      %v807 = vmul.f32 %v621, %v805
      %v808 = vmul.f32 %v622, %v805
      %v809 = vmul.f32 %v623, %v805
      %v810 = vmul.f32 %v624, %v805
      %v811 = vmul.f32 %v625, %v805
      %v812 = vmul.f32 %v626, %v805
      %v813 = vmul.f32 %v627, %v805
      %v814 = vmul.f32 %v628, %v805
      %v815 = vmul.f32 %v629, %v805
      %v816 = vmul.f32 %v630, %v805
      %v817 = vmul.f32 %v631, %v805
      %v818 = vmul.f32 %v632, %v805
      %v819 = vmul.f32 %v633, %v805
      %v820 = vmul.f32 %v634, %v805
      %v821 = vmul.f32 %v635, %v805
      %v822 = vmul.f32 %v636, %v805
      %v823 = vmul.f32 %v637, %v805
      %v824 = vmul.f32 %v638, %v805
      %v825 = vmul.f32 %v639, %v805
      %v826 = vmul.f32 %v640, %v805
      %v827 = vmul.f32 %v641, %v805
      %v828 = vmul.f32 %v642, %v805
      %v829 = vmul.f32 %v643, %v805
      %v830 = vmul.f32 %v644, %v805
      %v831 = vmul.f32 %v645, %v805
      %v832 = vmul.f32 %v646, %v805
      %v833 = vmul.f32 %v647, %v805
      %v834 = vmul.f32 %v648, %v805
      %v835 = vmul.f32 %v649, %v805
      %v836 = vmul.f32 %v650, %v805
      %v837 = vmul.f32 %v651, %v805
      %v838 = vadd.f32 %v770, %v806
      %v839 = vadd.f32 %v771, %v807
      %v840 = vadd.f32 %v772, %v808
      %v841 = vadd.f32 %v773, %v809
      %v842 = vadd.f32 %v774, %v810
      %v843 = vadd.f32 %v775, %v811
      %v844 = vadd.f32 %v776, %v812
      %v845 = vadd.f32 %v777, %v813
      %v846 = vadd.f32 %v778, %v814
      %v847 = vadd.f32 %v779, %v815
      %v848 = vadd.f32 %v780, %v816
      %v849 = vadd.f32 %v781, %v817
      %v850 = vadd.f32 %v782, %v818
      %v851 = vadd.f32 %v783, %v819
      %v852 = vadd.f32 %v784, %v820
      %v853 = vadd.f32 %v785, %v821
      %v854 = vadd.f32 %v786, %v822
      %v855 = vadd.f32 %v787, %v823
      %v856 = vadd.f32 %v788, %v824
      %v857 = vadd.f32 %v789, %v825
      %v858 = vadd.f32 %v790, %v826
      %v859 = vadd.f32 %v791, %v827
      %v860 = vadd.f32 %v792, %v828
      %v861 = vadd.f32 %v793, %v829
      %v862 = vadd.f32 %v794, %v830
      %v863 = vadd.f32 %v795, %v831
      %v864 = vadd.f32 %v796, %v832
      %v865 = vadd.f32 %v797, %v833
      %v866 = vadd.f32 %v798, %v834
      %v867 = vadd.f32 %v799, %v835
      %v868 = vadd.f32 %v800, %v836
      %v869 = vadd.f32 %v801, %v837
      %v870 = vlaneseq
      %v871 = vshrl.u32 %v870, 7
      %v872 = vsub.s32 0, %v871
      %v873 = vrot.slane %v765, %v872
      %v874 = vmul.f32 %v622, %v873
      %v875 = vmul.f32 %v623, %v873
      %v876 = vmul.f32 %v624, %v873
      %v877 = vmul.f32 %v625, %v873
      %v878 = vmul.f32 %v626, %v873
      %v879 = vmul.f32 %v627, %v873
      %v880 = vmul.f32 %v628, %v873
      %v881 = vmul.f32 %v629, %v873
      %v882 = vmul.f32 %v630, %v873
      %v883 = vmul.f32 %v631, %v873
      %v884 = vmul.f32 %v632, %v873
      %v885 = vmul.f32 %v633, %v873
      %v886 = vmul.f32 %v634, %v873
      %v887 = vmul.f32 %v635, %v873
      %v888 = vmul.f32 %v636, %v873
      %v889 = vmul.f32 %v637, %v873
      %v890 = vmul.f32 %v638, %v873
      %v891 = vmul.f32 %v639, %v873
      %v892 = vmul.f32 %v640, %v873
      %v893 = vmul.f32 %v641, %v873
      %v894 = vmul.f32 %v642, %v873
      %v895 = vmul.f32 %v643, %v873
      %v896 = vmul.f32 %v644, %v873
      %v897 = vmul.f32 %v645, %v873
      %v898 = vmul.f32 %v646, %v873
      %v899 = vmul.f32 %v647, %v873
      %v900 = vmul.f32 %v648, %v873
      %v901 = vmul.f32 %v649, %v873
      %v902 = vmul.f32 %v650, %v873
      %v903 = vmul.f32 %v651, %v873
      %v904 = vmul.f32 %v652, %v873
      %v905 = vmul.f32 %v653, %v873
      %v906 = vadd.f32 %v838, %v874
      %v907 = vadd.f32 %v839, %v875
      %v908 = vadd.f32 %v840, %v876
      %v909 = vadd.f32 %v841, %v877
      %v910 = vadd.f32 %v842, %v878
      %v911 = vadd.f32 %v843, %v879
      %v912 = vadd.f32 %v844, %v880
      %v913 = vadd.f32 %v845, %v881
      %v914 = vadd.f32 %v846, %v882
      %v915 = vadd.f32 %v847, %v883
      %v916 = vadd.f32 %v848, %v884
      %v917 = vadd.f32 %v849, %v885
      %v918 = vadd.f32 %v850, %v886
      %v919 = vadd.f32 %v851, %v887
      %v920 = vadd.f32 %v852, %v888
      %v921 = vadd.f32 %v853, %v889
      %v922 = vadd.f32 %v854, %v890
      %v923 = vadd.f32 %v855, %v891
      %v924 = vadd.f32 %v856, %v892
      %v925 = vadd.f32 %v857, %v893
      %v926 = vadd.f32 %v858, %v894
      %v927 = vadd.f32 %v859, %v895
      %v928 = vadd.f32 %v860, %v896
      %v929 = vadd.f32 %v861, %v897
      %v930 = vadd.f32 %v862, %v898
      %v931 = vadd.f32 %v863, %v899
      %v932 = vadd.f32 %v864, %v900
      %v933 = vadd.f32 %v865, %v901
      %v934 = vadd.f32 %v866, %v902
      %v935 = vadd.f32 %v867, %v903
      %v936 = vadd.f32 %v868, %v904
      %v937 = vadd.f32 %v869, %v905
      %v938 = vlaneseq
      %v939 = vshrl.u32 %v938, 7
      %v940 = vsub.s32 1, %v939
      %v941 = vrot.slane %v763, %v940
      %v942 = vmul.f32 %v518, %v941
      %v943 = vmul.f32 %v519, %v941
      %v944 = vmul.f32 %v478, %v941
      %v945 = vmul.f32 %v479, %v941
      %v946 = vmul.f32 %v480, %v941
      %v947 = vmul.f32 %v481, %v941
      %v948 = vmul.f32 %v482, %v941
      %v949 = vmul.f32 %v483, %v941
      %v950 = vmul.f32 %v484, %v941
      %v951 = vmul.f32 %v485, %v941
      %v952 = vmul.f32 %v486, %v941
      %v953 = vmul.f32 %v487, %v941
      %v954 = vmul.f32 %v488, %v941
      %v955 = vmul.f32 %v489, %v941
      %v956 = vmul.f32 %v490, %v941
      %v957 = vmul.f32 %v491, %v941
      %v958 = vmul.f32 %v492, %v941
      %v959 = vmul.f32 %v493, %v941
      %v960 = vmul.f32 %v494, %v941
      %v961 = vmul.f32 %v495, %v941
      %v962 = vmul.f32 %v496, %v941
      %v963 = vmul.f32 %v497, %v941
      %v964 = vmul.f32 %v498, %v941
      %v965 = vmul.f32 %v499, %v941
      %v966 = vmul.f32 %v500, %v941
      %v967 = vmul.f32 %v501, %v941
      %v968 = vmul.f32 %v502, %v941
      %v969 = vmul.f32 %v503, %v941
      %v970 = vmul.f32 %v504, %v941
      %v971 = vmul.f32 %v505, %v941
      %v972 = vmul.f32 %v506, %v941
      %v973 = vmul.f32 %v507, %v941
      %v974 = vadd.f32 %v906, %v942
      %v975 = vadd.f32 %v907, %v943
      %v976 = vadd.f32 %v908, %v944
      %v977 = vadd.f32 %v909, %v945
      %v978 = vadd.f32 %v910, %v946
      %v979 = vadd.f32 %v911, %v947
      %v980 = vadd.f32 %v912, %v948
      %v981 = vadd.f32 %v913, %v949
      %v982 = vadd.f32 %v914, %v950
      %v983 = vadd.f32 %v915, %v951
      %v984 = vadd.f32 %v916, %v952
      %v985 = vadd.f32 %v917, %v953
      %v986 = vadd.f32 %v918, %v954
      %v987 = vadd.f32 %v919, %v955
      %v988 = vadd.f32 %v920, %v956
      %v989 = vadd.f32 %v921, %v957
      %v990 = vadd.f32 %v922, %v958
      %v991 = vadd.f32 %v923, %v959
      %v992 = vadd.f32 %v924, %v960
      %v993 = vadd.f32 %v925, %v961
      %v994 = vadd.f32 %v926, %v962
      %v995 = vadd.f32 %v927, %v963
      %v996 = vadd.f32 %v928, %v964
      %v997 = vadd.f32 %v929, %v965
      %v998 = vadd.f32 %v930, %v966
      %v999 = vadd.f32 %v931, %v967
      %v1000 = vadd.f32 %v932, %v968
      %v1001 = vadd.f32 %v933, %v969
      %v1002 = vadd.f32 %v934, %v970
      %v1003 = vadd.f32 %v935, %v971
      %v1004 = vadd.f32 %v936, %v972
      %v1005 = vadd.f32 %v937, %v973
      %v1006 = vlaneseq
      %v1007 = vshrl.u32 %v1006, 7
      %v1008 = vsub.s32 1, %v1007
      %v1009 = vrot.slane %v764, %v1008
      %v1010 = vmul.f32 %v478, %v1009
      %v1011 = vmul.f32 %v479, %v1009
      %v1012 = vmul.f32 %v480, %v1009
      %v1013 = vmul.f32 %v481, %v1009
      %v1014 = vmul.f32 %v482, %v1009
      %v1015 = vmul.f32 %v483, %v1009
      %v1016 = vmul.f32 %v484, %v1009
      %v1017 = vmul.f32 %v485, %v1009
      %v1018 = vmul.f32 %v486, %v1009
      %v1019 = vmul.f32 %v487, %v1009
      %v1020 = vmul.f32 %v488, %v1009
      %v1021 = vmul.f32 %v489, %v1009
      %v1022 = vmul.f32 %v490, %v1009
      %v1023 = vmul.f32 %v491, %v1009
      %v1024 = vmul.f32 %v492, %v1009
      %v1025 = vmul.f32 %v493, %v1009
      %v1026 = vmul.f32 %v494, %v1009
      %v1027 = vmul.f32 %v495, %v1009
      %v1028 = vmul.f32 %v496, %v1009
      %v1029 = vmul.f32 %v497, %v1009
      %v1030 = vmul.f32 %v498, %v1009
      %v1031 = vmul.f32 %v499, %v1009
      %v1032 = vmul.f32 %v500, %v1009
      %v1033 = vmul.f32 %v501, %v1009
      %v1034 = vmul.f32 %v502, %v1009
      %v1035 = vmul.f32 %v503, %v1009
      %v1036 = vmul.f32 %v504, %v1009
      %v1037 = vmul.f32 %v505, %v1009
      %v1038 = vmul.f32 %v506, %v1009
      %v1039 = vmul.f32 %v507, %v1009
      %v1040 = vmul.f32 %v508, %v1009
      %v1041 = vmul.f32 %v509, %v1009
      %v1042 = vadd.f32 %v974, %v1010
      %v1043 = vadd.f32 %v975, %v1011
      %v1044 = vadd.f32 %v976, %v1012
      %v1045 = vadd.f32 %v977, %v1013
      %v1046 = vadd.f32 %v978, %v1014
      %v1047 = vadd.f32 %v979, %v1015
      %v1048 = vadd.f32 %v980, %v1016
      %v1049 = vadd.f32 %v981, %v1017
      %v1050 = vadd.f32 %v982, %v1018
      %v1051 = vadd.f32 %v983, %v1019
      %v1052 = vadd.f32 %v984, %v1020
      %v1053 = vadd.f32 %v985, %v1021
      %v1054 = vadd.f32 %v986, %v1022
      %v1055 = vadd.f32 %v987, %v1023
      %v1056 = vadd.f32 %v988, %v1024
      %v1057 = vadd.f32 %v989, %v1025
      %v1058 = vadd.f32 %v990, %v1026
      %v1059 = vadd.f32 %v991, %v1027
      %v1060 = vadd.f32 %v992, %v1028
      %v1061 = vadd.f32 %v993, %v1029
      %v1062 = vadd.f32 %v994, %v1030
      %v1063 = vadd.f32 %v995, %v1031
      %v1064 = vadd.f32 %v996, %v1032
      %v1065 = vadd.f32 %v997, %v1033
      %v1066 = vadd.f32 %v998, %v1034
      %v1067 = vadd.f32 %v999, %v1035
      %v1068 = vadd.f32 %v1000, %v1036
      %v1069 = vadd.f32 %v1001, %v1037
      %v1070 = vadd.f32 %v1002, %v1038
      %v1071 = vadd.f32 %v1003, %v1039
      %v1072 = vadd.f32 %v1004, %v1040
      %v1073 = vadd.f32 %v1005, %v1041
      %v1074 = vlaneseq
      %v1075 = vshrl.u32 %v1074, 7
      %v1076 = vsub.s32 1, %v1075
      %v1077 = vrot.slane %v765, %v1076
      %v1078 = vmul.f32 %v480, %v1077
      %v1079 = vmul.f32 %v481, %v1077
      %v1080 = vmul.f32 %v482, %v1077
      %v1081 = vmul.f32 %v483, %v1077
      %v1082 = vmul.f32 %v484, %v1077
      %v1083 = vmul.f32 %v485, %v1077
      %v1084 = vmul.f32 %v486, %v1077
      %v1085 = vmul.f32 %v487, %v1077
      %v1086 = vmul.f32 %v488, %v1077
      %v1087 = vmul.f32 %v489, %v1077
      %v1088 = vmul.f32 %v490, %v1077
      %v1089 = vmul.f32 %v491, %v1077
      %v1090 = vmul.f32 %v492, %v1077
      %v1091 = vmul.f32 %v493, %v1077
      %v1092 = vmul.f32 %v494, %v1077
      %v1093 = vmul.f32 %v495, %v1077
      %v1094 = vmul.f32 %v496, %v1077
      %v1095 = vmul.f32 %v497, %v1077
      %v1096 = vmul.f32 %v498, %v1077
      %v1097 = vmul.f32 %v499, %v1077
      %v1098 = vmul.f32 %v500, %v1077
      %v1099 = vmul.f32 %v501, %v1077
      %v1100 = vmul.f32 %v502, %v1077
      %v1101 = vmul.f32 %v503, %v1077
      %v1102 = vmul.f32 %v504, %v1077
      %v1103 = vmul.f32 %v505, %v1077
      %v1104 = vmul.f32 %v506, %v1077
      %v1105 = vmul.f32 %v507, %v1077
      %v1106 = vmul.f32 %v508, %v1077
      %v1107 = vmul.f32 %v509, %v1077
      %v1108 = vmul.f32 %v528, %v1077
      %v1109 = vmul.f32 %v529, %v1077
      %v1110 = vadd.f32 %v1042, %v1078
      %v1111 = vadd.f32 %v1043, %v1079
      %v1112 = vadd.f32 %v1044, %v1080
      %v1113 = vadd.f32 %v1045, %v1081
      %v1114 = vadd.f32 %v1046, %v1082
      %v1115 = vadd.f32 %v1047, %v1083
      %v1116 = vadd.f32 %v1048, %v1084
      %v1117 = vadd.f32 %v1049, %v1085
      %v1118 = vadd.f32 %v1050, %v1086
      %v1119 = vadd.f32 %v1051, %v1087
      %v1120 = vadd.f32 %v1052, %v1088
      %v1121 = vadd.f32 %v1053, %v1089
      %v1122 = vadd.f32 %v1054, %v1090
      %v1123 = vadd.f32 %v1055, %v1091
      %v1124 = vadd.f32 %v1056, %v1092
      %v1125 = vadd.f32 %v1057, %v1093
      %v1126 = vadd.f32 %v1058, %v1094
      %v1127 = vadd.f32 %v1059, %v1095
      %v1128 = vadd.f32 %v1060, %v1096
      %v1129 = vadd.f32 %v1061, %v1097
      %v1130 = vadd.f32 %v1062, %v1098
      %v1131 = vadd.f32 %v1063, %v1099
      %v1132 = vadd.f32 %v1064, %v1100
      %v1133 = vadd.f32 %v1065, %v1101
      %v1134 = vadd.f32 %v1066, %v1102
      %v1135 = vadd.f32 %v1067, %v1103
      %v1136 = vadd.f32 %v1068, %v1104
      %v1137 = vadd.f32 %v1069, %v1105
      %v1138 = vadd.f32 %v1070, %v1106
      %v1139 = vadd.f32 %v1071, %v1107
      %v1140 = vadd.f32 %v1072, %v1108
      %v1141 = vadd.f32 %v1073, %v1109
      %v1142 = vlaneseq
      %v1143 = vshrl.u32 %v1142, 7
      %v1144 = vsub.s32 2, %v1143
      %v1145 = vrot.slane %v763, %v1144
      %v1146 = vmul.f32 %v727, %v1145
      %v1147 = vmul.f32 %v728, %v1145
      %v1148 = vmul.f32 %v729, %v1145
      %v1149 = vmul.f32 %v730, %v1145
      %v1150 = vmul.f32 %v731, %v1145
      %v1151 = vmul.f32 %v732, %v1145
      %v1152 = vmul.f32 %v733, %v1145
      %v1153 = vmul.f32 %v734, %v1145
      %v1154 = vmul.f32 %v735, %v1145
      %v1155 = vmul.f32 %v736, %v1145
      %v1156 = vmul.f32 %v737, %v1145
      %v1157 = vmul.f32 %v738, %v1145
      %v1158 = vmul.f32 %v739, %v1145
      %v1159 = vmul.f32 %v740, %v1145
      %v1160 = vmul.f32 %v741, %v1145
      %v1161 = vmul.f32 %v742, %v1145
      %v1162 = vmul.f32 %v743, %v1145
      %v1163 = vmul.f32 %v744, %v1145
      %v1164 = vmul.f32 %v745, %v1145
      %v1165 = vmul.f32 %v746, %v1145
      %v1166 = vmul.f32 %v747, %v1145
      %v1167 = vmul.f32 %v748, %v1145
      %v1168 = vmul.f32 %v749, %v1145
      %v1169 = vmul.f32 %v750, %v1145
      %v1170 = vmul.f32 %v751, %v1145
      %v1171 = vmul.f32 %v752, %v1145
      %v1172 = vmul.f32 %v753, %v1145
      %v1173 = vmul.f32 %v754, %v1145
      %v1174 = vmul.f32 %v755, %v1145
      %v1175 = vmul.f32 %v756, %v1145
      %v1176 = vmul.f32 %v757, %v1145
      %v1177 = vmul.f32 %v758, %v1145
      %v1178 = vadd.f32 %v1110, %v1146
      %v1179 = vadd.f32 %v1111, %v1147
      %v1180 = vadd.f32 %v1112, %v1148
      %v1181 = vadd.f32 %v1113, %v1149
      %v1182 = vadd.f32 %v1114, %v1150
      %v1183 = vadd.f32 %v1115, %v1151
      %v1184 = vadd.f32 %v1116, %v1152
      %v1185 = vadd.f32 %v1117, %v1153
      %v1186 = vadd.f32 %v1118, %v1154
      %v1187 = vadd.f32 %v1119, %v1155
      %v1188 = vadd.f32 %v1120, %v1156
      %v1189 = vadd.f32 %v1121, %v1157
      %v1190 = vadd.f32 %v1122, %v1158
      %v1191 = vadd.f32 %v1123, %v1159
      %v1192 = vadd.f32 %v1124, %v1160
      %v1193 = vadd.f32 %v1125, %v1161
      %v1194 = vadd.f32 %v1126, %v1162
      %v1195 = vadd.f32 %v1127, %v1163
      %v1196 = vadd.f32 %v1128, %v1164
      %v1197 = vadd.f32 %v1129, %v1165
      %v1198 = vadd.f32 %v1130, %v1166
      %v1199 = vadd.f32 %v1131, %v1167
      %v1200 = vadd.f32 %v1132, %v1168
      %v1201 = vadd.f32 %v1133, %v1169
      %v1202 = vadd.f32 %v1134, %v1170
      %v1203 = vadd.f32 %v1135, %v1171
      %v1204 = vadd.f32 %v1136, %v1172
      %v1205 = vadd.f32 %v1137, %v1173
      %v1206 = vadd.f32 %v1138, %v1174
      %v1207 = vadd.f32 %v1139, %v1175
      %v1208 = vadd.f32 %v1140, %v1176
      %v1209 = vadd.f32 %v1141, %v1177
      %v1210 = vlaneseq
      %v1211 = vshrl.u32 %v1210, 7
      %v1212 = vsub.s32 2, %v1211
      %v1213 = vrot.slane %v764, %v1212
      %v1214 = vmul.f32 %v729, %v1213
      %v1215 = vmul.f32 %v730, %v1213
      %v1216 = vmul.f32 %v731, %v1213
      %v1217 = vmul.f32 %v732, %v1213
      %v1218 = vmul.f32 %v733, %v1213
      %v1219 = vmul.f32 %v734, %v1213
      %v1220 = vmul.f32 %v735, %v1213
      %v1221 = vmul.f32 %v736, %v1213
      %v1222 = vmul.f32 %v737, %v1213
      %v1223 = vmul.f32 %v738, %v1213
      %v1224 = vmul.f32 %v739, %v1213
      %v1225 = vmul.f32 %v740, %v1213
      %v1226 = vmul.f32 %v741, %v1213
      %v1227 = vmul.f32 %v742, %v1213
      %v1228 = vmul.f32 %v743, %v1213
      %v1229 = vmul.f32 %v744, %v1213
      %v1230 = vmul.f32 %v745, %v1213
      %v1231 = vmul.f32 %v746, %v1213
      %v1232 = vmul.f32 %v747, %v1213
      %v1233 = vmul.f32 %v748, %v1213
      %v1234 = vmul.f32 %v749, %v1213
      %v1235 = vmul.f32 %v750, %v1213
      %v1236 = vmul.f32 %v751, %v1213
      %v1237 = vmul.f32 %v752, %v1213
      %v1238 = vmul.f32 %v753, %v1213
      %v1239 = vmul.f32 %v754, %v1213
      %v1240 = vmul.f32 %v755, %v1213
      %v1241 = vmul.f32 %v756, %v1213
      %v1242 = vmul.f32 %v757, %v1213
      %v1243 = vmul.f32 %v758, %v1213
      %v1244 = vmul.f32 %v759, %v1213
      %v1245 = vmul.f32 %v760, %v1213
      %v1246 = vadd.f32 %v1178, %v1214
      %v1247 = vadd.f32 %v1179, %v1215
      %v1248 = vadd.f32 %v1180, %v1216
      %v1249 = vadd.f32 %v1181, %v1217
      %v1250 = vadd.f32 %v1182, %v1218
      %v1251 = vadd.f32 %v1183, %v1219
      %v1252 = vadd.f32 %v1184, %v1220
      %v1253 = vadd.f32 %v1185, %v1221
      %v1254 = vadd.f32 %v1186, %v1222
      %v1255 = vadd.f32 %v1187, %v1223
      %v1256 = vadd.f32 %v1188, %v1224
      %v1257 = vadd.f32 %v1189, %v1225
      %v1258 = vadd.f32 %v1190, %v1226
      %v1259 = vadd.f32 %v1191, %v1227
      %v1260 = vadd.f32 %v1192, %v1228
      %v1261 = vadd.f32 %v1193, %v1229
      %v1262 = vadd.f32 %v1194, %v1230
      %v1263 = vadd.f32 %v1195, %v1231
      %v1264 = vadd.f32 %v1196, %v1232
      %v1265 = vadd.f32 %v1197, %v1233
      %v1266 = vadd.f32 %v1198, %v1234
      %v1267 = vadd.f32 %v1199, %v1235
      %v1268 = vadd.f32 %v1200, %v1236
      %v1269 = vadd.f32 %v1201, %v1237
      %v1270 = vadd.f32 %v1202, %v1238
      %v1271 = vadd.f32 %v1203, %v1239
      %v1272 = vadd.f32 %v1204, %v1240
      %v1273 = vadd.f32 %v1205, %v1241
      %v1274 = vadd.f32 %v1206, %v1242
      %v1275 = vadd.f32 %v1207, %v1243
      %v1276 = vadd.f32 %v1208, %v1244
      %v1277 = vadd.f32 %v1209, %v1245
      %v1278 = vlaneseq
      %v1279 = vshrl.u32 %v1278, 7
      %v1280 = vsub.s32 2, %v1279
      %v1281 = vrot.slane %v765, %v1280
      %v1282 = vmul.f32 %v731, %v1281
      %v1283 = vmul.f32 %v732, %v1281
      %v1284 = vmul.f32 %v733, %v1281
      %v1285 = vmul.f32 %v734, %v1281
      %v1286 = vmul.f32 %v735, %v1281
      %v1287 = vmul.f32 %v736, %v1281
      %v1288 = vmul.f32 %v737, %v1281
      %v1289 = vmul.f32 %v738, %v1281
      %v1290 = vmul.f32 %v739, %v1281
      %v1291 = vmul.f32 %v740, %v1281
      %v1292 = vmul.f32 %v741, %v1281
      %v1293 = vmul.f32 %v742, %v1281
      %v1294 = vmul.f32 %v743, %v1281
      %v1295 = vmul.f32 %v744, %v1281
      %v1296 = vmul.f32 %v745, %v1281
      %v1297 = vmul.f32 %v746, %v1281
      %v1298 = vmul.f32 %v747, %v1281
      %v1299 = vmul.f32 %v748, %v1281
      %v1300 = vmul.f32 %v749, %v1281
      %v1301 = vmul.f32 %v750, %v1281
      %v1302 = vmul.f32 %v751, %v1281
      %v1303 = vmul.f32 %v752, %v1281
      %v1304 = vmul.f32 %v753, %v1281
      %v1305 = vmul.f32 %v754, %v1281
      %v1306 = vmul.f32 %v755, %v1281
      %v1307 = vmul.f32 %v756, %v1281
      %v1308 = vmul.f32 %v757, %v1281
      %v1309 = vmul.f32 %v758, %v1281
      %v1310 = vmul.f32 %v759, %v1281
      %v1311 = vmul.f32 %v760, %v1281
      %v1312 = vmul.f32 %v761, %v1281
      %v1313 = vmul.f32 %v762, %v1281
      %v1314 = vadd.f32 %v1246, %v1282
      %v1315 = vadd.f32 %v1247, %v1283
      %v1316 = vadd.f32 %v1248, %v1284
      %v1317 = vadd.f32 %v1249, %v1285
      %v1318 = vadd.f32 %v1250, %v1286
      %v1319 = vadd.f32 %v1251, %v1287
      %v1320 = vadd.f32 %v1252, %v1288
      %v1321 = vadd.f32 %v1253, %v1289
      %v1322 = vadd.f32 %v1254, %v1290
      %v1323 = vadd.f32 %v1255, %v1291
      %v1324 = vadd.f32 %v1256, %v1292
      %v1325 = vadd.f32 %v1257, %v1293
      %v1326 = vadd.f32 %v1258, %v1294
      %v1327 = vadd.f32 %v1259, %v1295
      %v1328 = vadd.f32 %v1260, %v1296
      %v1329 = vadd.f32 %v1261, %v1297
      %v1330 = vadd.f32 %v1262, %v1298
      %v1331 = vadd.f32 %v1263, %v1299
      %v1332 = vadd.f32 %v1264, %v1300
      %v1333 = vadd.f32 %v1265, %v1301
      %v1334 = vadd.f32 %v1266, %v1302
      %v1335 = vadd.f32 %v1267, %v1303
      %v1336 = vadd.f32 %v1268, %v1304
      %v1337 = vadd.f32 %v1269, %v1305
      %v1338 = vadd.f32 %v1270, %v1306
      %v1339 = vadd.f32 %v1271, %v1307
      %v1340 = vadd.f32 %v1272, %v1308
      %v1341 = vadd.f32 %v1273, %v1309
      %v1342 = vadd.f32 %v1274, %v1310
      %v1343 = vadd.f32 %v1275, %v1311
      %v1344 = vadd.f32 %v1276, %v1312
      %v1345 = vadd.f32 %v1277, %v1313
      %v1346 = vld [vmem:[%s4] sm:$0x1]
      %v1348 = vlaneseq
      %v1349 = vshrl.u32 %v1348, 7
      %v1350 = vsub.s32 0, %v1349
      %v1351 = vrot.slane %v1346, %v1350
      %v1353 = vadd.f32 %v1314, %v1351
      %v1354 = vadd.f32 %v1315, %v1351
      %v1355 = vadd.f32 %v1316, %v1351
      %v1356 = vadd.f32 %v1317, %v1351
      %v1357 = vadd.f32 %v1318, %v1351
      %v1358 = vadd.f32 %v1319, %v1351
      %v1359 = vadd.f32 %v1320, %v1351
      %v1360 = vadd.f32 %v1321, %v1351
      %v1361 = vadd.f32 %v1322, %v1351
      %v1362 = vadd.f32 %v1323, %v1351
      %v1363 = vadd.f32 %v1324, %v1351
      %v1364 = vadd.f32 %v1325, %v1351
      %v1365 = vadd.f32 %v1326, %v1351
      %v1366 = vadd.f32 %v1327, %v1351
      %v1367 = vadd.f32 %v1328, %v1351
      %v1368 = vadd.f32 %v1329, %v1351
      %v1369 = vadd.f32 %v1330, %v1351
      %v1370 = vadd.f32 %v1331, %v1351
      %v1371 = vadd.f32 %v1332, %v1351
      %v1372 = vadd.f32 %v1333, %v1351
      %v1373 = vadd.f32 %v1334, %v1351
      %v1374 = vadd.f32 %v1335, %v1351
      %v1375 = vadd.f32 %v1336, %v1351
      %v1376 = vadd.f32 %v1337, %v1351
      %v1377 = vadd.f32 %v1338, %v1351
      %v1378 = vadd.f32 %v1339, %v1351
      %v1379 = vadd.f32 %v1340, %v1351
      %v1380 = vadd.f32 %v1341, %v1351
      %v1381 = vadd.f32 %v1342, %v1351
      %v1382 = vadd.f32 %v1343, %v1351
      %v1383 = vadd.f32 %v1344, %v1351
      %v1384 = vadd.f32 %v1345, %v1351
      %v1385 = vmax.f32 %v1353, 0.0
      %v1386 = vmax.f32 %v1354, 0.0
      %v1387 = vmax.f32 %v1355, 0.0
      %v1388 = vmax.f32 %v1356, 0.0
      %v1389 = vmax.f32 %v1357, 0.0
      %v1390 = vmax.f32 %v1358, 0.0
      %v1391 = vmax.f32 %v1359, 0.0
      %v1392 = vmax.f32 %v1360, 0.0
      %v1393 = vmax.f32 %v1361, 0.0
      %v1394 = vmax.f32 %v1362, 0.0
      %v1395 = vmax.f32 %v1363, 0.0
      %v1396 = vmax.f32 %v1364, 0.0
      %v1397 = vmax.f32 %v1365, 0.0
      %v1398 = vmax.f32 %v1366, 0.0
      %v1399 = vmax.f32 %v1367, 0.0
      %v1400 = vmax.f32 %v1368, 0.0
      %v1401 = vmax.f32 %v1369, 0.0
      %v1402 = vmax.f32 %v1370, 0.0
      %v1403 = vmax.f32 %v1371, 0.0
      %v1404 = vmax.f32 %v1372, 0.0
      %v1405 = vmax.f32 %v1373, 0.0
      %v1406 = vmax.f32 %v1374, 0.0
      %v1407 = vmax.f32 %v1375, 0.0
      %v1408 = vmax.f32 %v1376, 0.0
      %v1409 = vmax.f32 %v1377, 0.0
      %v1410 = vmax.f32 %v1378, 0.0
      %v1411 = vmax.f32 %v1379, 0.0
      %v1412 = vmax.f32 %v1380, 0.0
      %v1413 = vmax.f32 %v1381, 0.0
      %v1414 = vmax.f32 %v1382, 0.0
      %v1415 = vmax.f32 %v1383, 0.0
      %v1416 = vmax.f32 %v1384, 0.0
      %v1417 = vpack.c.bf16 %v1386, %v1385
      %v1418 = vpack.c.bf16 %v1388, %v1387
      %v1419 = vpack.c.bf16 %v1390, %v1389
      %v1420 = vpack.c.bf16 %v1392, %v1391
      %v1421 = vpack.c.bf16 %v1394, %v1393
      %v1422 = vpack.c.bf16 %v1396, %v1395
      %v1423 = vpack.c.bf16 %v1398, %v1397
      %v1424 = vpack.c.bf16 %v1400, %v1399
      %v1425 = vpack.c.bf16 %v1402, %v1401
      %v1426 = vpack.c.bf16 %v1404, %v1403
      %v1427 = vpack.c.bf16 %v1406, %v1405
      %v1428 = vpack.c.bf16 %v1408, %v1407
      %v1429 = vpack.c.bf16 %v1410, %v1409
      %v1430 = vpack.c.bf16 %v1412, %v1411
      %v1431 = vpack.c.bf16 %v1414, %v1413
      %v1432 = vpack.c.bf16 %v1416, %v1415
      %v1433 = vld [vmem:[%s5] sm:$0x3]
      %v1434 = vld [vmem:[%s6] sm:$0x1]
      %v1436 = vlaneseq
      %v1437 = vshrl.u32 %v1436, 7
      %v1438 = vsub.s32 0, %v1437
      %v1439 = vrot.slane %v1434, %v1438
      %vm1441 = vcmask 31744
      %v1443 = vsel %vm1441, %v1417, 0
      %v1446 = vsel %vm1441, %v1418, 0
      %v1449 = vsel %vm1441, %v1419, 0
      %v1452 = vsel %vm1441, %v1420, 0
      %v1455 = vsel %vm1441, %v1421, 0
      %v1458 = vsel %vm1441, %v1422, 0
      %v1461 = vsel %vm1441, %v1423, 0
      %v1464 = vsel %vm1441, %v1424, 0
      %v1467 = vsel %vm1441, %v1425, 0
      %v1470 = vsel %vm1441, %v1426, 0
      %v1473 = vsel %vm1441, %v1427, 0
      %v1476 = vsel %vm1441, %v1428, 0
      %v1479 = vsel %vm1441, %v1429, 0
      %v1482 = vsel %vm1441, %v1430, 0
      %v1485 = vsel %vm1441, %v1431, 0
      %v1488 = vsel %vm1441, %v1432, 0
      %vm1490 = vcmask 1041408
      %v1492 = vsel %vm1490, %v1433, 0
      %1494 = vmatprep.subr.bf16.mxu0 0
      %1495 = vmatpush1.bf16.msra.mxu0 0
      %1496 = vmatprep.subr.bf16.mxu0 0
      %1497 = vmatpush1.bf16.msra.mxu0 0
      %1498 = vmatprep.subr.bf16.mxu0 0
      %1499 = vmatpush1.bf16.msra.mxu0 0
      %1500 = vmatprep.subr.bf16.mxu0 0
      %1501 = vmatpush1.bf16.msra.mxu0 0
      %1502 = vmatprep.subr.bf16.mxu0 0
      %1503 = vmatpush1.bf16.msra.mxu0 0
      %1504 = vmatprep.subr.bf16.mxu0 0
      %1505 = vmatpush1.bf16.msra.mxu0 0
      %1506 = vmatprep.subr.bf16.mxu0 0
      %1507 = vmatpush1.bf16.msra.mxu0 0
      %1508 = vmatprep.subr.bf16.mxu0 0
      %1509 = vmatpush1.bf16.msra.mxu0 %v1492
      %1510 = vmatprep.subr.bf16.mxu0 0
      %1511 = vmatpush2.bf16.msra.mxu0 0
      %1512 = vmatprep.subr.bf16.mxu0 0
      %1513 = vmatpush2.bf16.msra.mxu0 0
      %1514 = vmatprep.subr.bf16.mxu0 0
      %1515 = vmatpush2.bf16.msra.mxu0 0
      %1516 = vmatprep.subr.bf16.mxu0 0
      %1517 = vmatpush2.bf16.msra.mxu0 0
      %1518 = vmatprep.subr.bf16.mxu0 0
      %1519 = vmatpush2.bf16.msra.mxu0 0
      %1520 = vmatprep.subr.bf16.mxu0 0
      %1521 = vmatpush2.bf16.msra.mxu0 0
      %1522 = vmatprep.subr.bf16.mxu0 0
      %1523 = vmatpush2.bf16.msra.mxu0 0
      %1524 = vmatprep.subr.bf16.mxu0 0
      %1525 = vmatpush2.bf16.msra.mxu0 0
      %1526 = vmatprep.mubr.bf16.mxu0 0
      %1527 = vmatmul.mubr.bf16.gmra.mxu0 %v1443
      %v1528 = vpop.f32.mrf.mxu0
      %v1529 = vadd.f32 %v1439, %v1528
      %v1530 = vpop.f32.mrf.mxu0
      %v1531 = vpop.f32.mrf.mxu0
      %v1532 = vadd.f32 %v1439, %v1531
      %v1533 = vpop.f32.mrf.mxu0
      %1534 = vmatprep.mubr.bf16.mxu0 0
      %1535 = vmatmul.mubr.bf16.gmra.mxu0 %v1446
      %v1536 = vpop.f32.mrf.mxu0
      %v1537 = vadd.f32 %v1439, %v1536
      %v1538 = vpop.f32.mrf.mxu0
      %v1539 = vpop.f32.mrf.mxu0
      %v1540 = vadd.f32 %v1439, %v1539
      %v1541 = vpop.f32.mrf.mxu0
      %1542 = vmatprep.mubr.bf16.mxu0 0
      %1543 = vmatmul.mubr.bf16.gmra.mxu0 %v1449
      %v1544 = vpop.f32.mrf.mxu0
      %v1545 = vadd.f32 %v1439, %v1544
      %v1546 = vpop.f32.mrf.mxu0
      %v1547 = vpop.f32.mrf.mxu0
      %v1548 = vadd.f32 %v1439, %v1547
      %v1549 = vpop.f32.mrf.mxu0
      %1550 = vmatprep.mubr.bf16.mxu0 0
      %1551 = vmatmul.mubr.bf16.gmra.mxu0 %v1452
      %v1552 = vpop.f32.mrf.mxu0
      %v1553 = vadd.f32 %v1439, %v1552
      %v1554 = vpop.f32.mrf.mxu0
      %v1555 = vpop.f32.mrf.mxu0
      %v1556 = vadd.f32 %v1439, %v1555
      %v1557 = vpop.f32.mrf.mxu0
      %1558 = vmatprep.mubr.bf16.mxu0 0
      %1559 = vmatmul.mubr.bf16.gmra.mxu0 %v1455
      %v1560 = vpop.f32.mrf.mxu0
      %v1561 = vadd.f32 %v1439, %v1560
      %v1562 = vpop.f32.mrf.mxu0
      %v1563 = vpop.f32.mrf.mxu0
      %v1564 = vadd.f32 %v1439, %v1563
      %v1565 = vpop.f32.mrf.mxu0
      %1566 = vmatprep.mubr.bf16.mxu0 0
      %1567 = vmatmul.mubr.bf16.gmra.mxu0 %v1458
      %v1568 = vpop.f32.mrf.mxu0
      %v1569 = vadd.f32 %v1439, %v1568
      %v1570 = vpop.f32.mrf.mxu0
      %v1571 = vpop.f32.mrf.mxu0
      %v1572 = vadd.f32 %v1439, %v1571
      %v1573 = vpop.f32.mrf.mxu0
      %1574 = vmatprep.mubr.bf16.mxu0 0
      %1575 = vmatmul.mubr.bf16.gmra.mxu0 %v1461
      %v1576 = vpop.f32.mrf.mxu0
      %v1577 = vadd.f32 %v1439, %v1576
      %v1578 = vpop.f32.mrf.mxu0
      %v1579 = vpop.f32.mrf.mxu0
      %v1580 = vadd.f32 %v1439, %v1579
      %v1581 = vpop.f32.mrf.mxu0
      %1582 = vmatprep.mubr.bf16.mxu0 0
      %1583 = vmatmul.mubr.bf16.gmra.mxu0 %v1464
      %v1584 = vpop.f32.mrf.mxu0
      %v1585 = vadd.f32 %v1439, %v1584
      %v1586 = vpop.f32.mrf.mxu0
      %v1587 = vpop.f32.mrf.mxu0
      %v1588 = vadd.f32 %v1439, %v1587
      %v1589 = vpop.f32.mrf.mxu0
      %1590 = vmatprep.mubr.bf16.mxu0 0
      %1591 = vmatmul.mubr.bf16.gmra.mxu0 %v1467
      %v1592 = vpop.f32.mrf.mxu0
      %v1593 = vadd.f32 %v1439, %v1592
      %v1594 = vpop.f32.mrf.mxu0
      %v1595 = vpop.f32.mrf.mxu0
      %v1596 = vadd.f32 %v1439, %v1595
      %v1597 = vpop.f32.mrf.mxu0
      %1598 = vmatprep.mubr.bf16.mxu0 0
      %1599 = vmatmul.mubr.bf16.gmra.mxu0 %v1470
      %v1600 = vpop.f32.mrf.mxu0
      %v1601 = vadd.f32 %v1439, %v1600
      %v1602 = vpop.f32.mrf.mxu0
      %v1603 = vpop.f32.mrf.mxu0
      %v1604 = vadd.f32 %v1439, %v1603
      %v1605 = vpop.f32.mrf.mxu0
      %1606 = vmatprep.mubr.bf16.mxu0 0
      %1607 = vmatmul.mubr.bf16.gmra.mxu0 %v1473
      %v1608 = vpop.f32.mrf.mxu0
      %v1609 = vadd.f32 %v1439, %v1608
      %v1610 = vpop.f32.mrf.mxu0
      %v1611 = vpop.f32.mrf.mxu0
      %v1612 = vadd.f32 %v1439, %v1611
      %v1613 = vpop.f32.mrf.mxu0
      %1614 = vmatprep.mubr.bf16.mxu0 0
      %1615 = vmatmul.mubr.bf16.gmra.mxu0 %v1476
      %v1616 = vpop.f32.mrf.mxu0
      %v1617 = vadd.f32 %v1439, %v1616
      %v1618 = vpop.f32.mrf.mxu0
      %v1619 = vpop.f32.mrf.mxu0
      %v1620 = vadd.f32 %v1439, %v1619
      %v1621 = vpop.f32.mrf.mxu0
      %1622 = vmatprep.mubr.bf16.mxu0 0
      %1623 = vmatmul.mubr.bf16.gmra.mxu0 %v1479
      %v1624 = vpop.f32.mrf.mxu0
      %v1625 = vadd.f32 %v1439, %v1624
      %v1626 = vpop.f32.mrf.mxu0
      %v1627 = vpop.f32.mrf.mxu0
      %v1628 = vadd.f32 %v1439, %v1627
      %v1629 = vpop.f32.mrf.mxu0
      %1630 = vmatprep.mubr.bf16.mxu0 0
      %1631 = vmatmul.mubr.bf16.gmra.mxu0 %v1482
      %v1632 = vpop.f32.mrf.mxu0
      %v1633 = vadd.f32 %v1439, %v1632
      %v1634 = vpop.f32.mrf.mxu0
      %v1635 = vpop.f32.mrf.mxu0
      %v1636 = vadd.f32 %v1439, %v1635
      %v1637 = vpop.f32.mrf.mxu0
      %1638 = vmatprep.mubr.bf16.mxu0 0
      %1639 = vmatmul.mubr.bf16.gmra.mxu0 %v1485
      %v1640 = vpop.f32.mrf.mxu0
      %v1641 = vadd.f32 %v1439, %v1640
      %v1642 = vpop.f32.mrf.mxu0
      %v1643 = vpop.f32.mrf.mxu0
      %v1644 = vadd.f32 %v1439, %v1643
      %v1645 = vpop.f32.mrf.mxu0
      %1646 = vmatprep.mubr.bf16.mxu0 0
      %1647 = vmatmul.mubr.bf16.gmra.mxu0 %v1488
      %v1648 = vpop.f32.mrf.mxu0
      %v1649 = vadd.f32 %v1439, %v1648
      %v1650 = vpop.f32.mrf.mxu0
      %v1651 = vpop.f32.mrf.mxu0
      %v1652 = vadd.f32 %v1439, %v1651
      %v1653 = vpop.f32.mrf.mxu0
      %1654 = vdwg.mxu0
      %v1655 = vmax.f32 %v1529, 0.0
      %v1656 = vmax.f32 %v1532, 0.0
      %v1657 = vmax.f32 %v1537, 0.0
      %v1658 = vmax.f32 %v1540, 0.0
      %v1659 = vmax.f32 %v1545, 0.0
      %v1660 = vmax.f32 %v1548, 0.0
      %v1661 = vmax.f32 %v1553, 0.0
      %v1662 = vmax.f32 %v1556, 0.0
      %v1663 = vmax.f32 %v1561, 0.0
      %v1664 = vmax.f32 %v1564, 0.0
      %v1665 = vmax.f32 %v1569, 0.0
      %v1666 = vmax.f32 %v1572, 0.0
      %v1667 = vmax.f32 %v1577, 0.0
      %v1668 = vmax.f32 %v1580, 0.0
      %v1669 = vmax.f32 %v1585, 0.0
      %v1670 = vmax.f32 %v1588, 0.0
      %v1671 = vmax.f32 %v1593, 0.0
      %v1672 = vmax.f32 %v1596, 0.0
      %v1673 = vmax.f32 %v1601, 0.0
      %v1674 = vmax.f32 %v1604, 0.0
      %v1675 = vmax.f32 %v1609, 0.0
      %v1676 = vmax.f32 %v1612, 0.0
      %v1677 = vmax.f32 %v1617, 0.0
      %v1678 = vmax.f32 %v1620, 0.0
      %v1679 = vmax.f32 %v1625, 0.0
      %v1680 = vmax.f32 %v1628, 0.0
      %v1681 = vmax.f32 %v1633, 0.0
      %v1682 = vmax.f32 %v1636, 0.0
      %v1683 = vmax.f32 %v1641, 0.0
      %v1684 = vmax.f32 %v1644, 0.0
      %v1685 = vmax.f32 %v1649, 0.0
      %v1686 = vmax.f32 %v1652, 0.0
      %v1687 = vpack.c.bf16 %v1656, %v1655
      %v1688 = vpack.c.bf16 %v1658, %v1657
      %v1689 = vpack.c.bf16 %v1660, %v1659
      %v1690 = vpack.c.bf16 %v1662, %v1661
      %v1691 = vpack.c.bf16 %v1664, %v1663
      %v1692 = vpack.c.bf16 %v1666, %v1665
      %v1693 = vpack.c.bf16 %v1668, %v1667
      %v1694 = vpack.c.bf16 %v1670, %v1669
      %v1695 = vpack.c.bf16 %v1672, %v1671
      %v1696 = vpack.c.bf16 %v1674, %v1673
      %v1697 = vpack.c.bf16 %v1676, %v1675
      %v1698 = vpack.c.bf16 %v1678, %v1677
      %v1699 = vpack.c.bf16 %v1680, %v1679
      %v1700 = vpack.c.bf16 %v1682, %v1681
      %v1701 = vpack.c.bf16 %v1684, %v1683
      %v1702 = vpack.c.bf16 %v1686, %v1685
      %v1719 = vunpack.c.l.b16 %v1687
      %v1720 = vunpack.c.h.b16 %v1687
      %v1721 = vunpack.c.l.b16 %v1688
      %v1722 = vunpack.c.h.b16 %v1688
      %v1723 = vunpack.c.l.b16 %v1689
      %v1724 = vunpack.c.h.b16 %v1689
      %v1725 = vunpack.c.l.b16 %v1690
      %v1726 = vunpack.c.h.b16 %v1690
      %v1727 = vunpack.c.l.b16 %v1691
      %v1728 = vunpack.c.h.b16 %v1691
      %v1729 = vunpack.c.l.b16 %v1692
      %v1730 = vunpack.c.h.b16 %v1692
      %v1731 = vunpack.c.l.b16 %v1693
      %v1732 = vunpack.c.h.b16 %v1693
      %v1733 = vunpack.c.l.b16 %v1694
      %v1734 = vunpack.c.h.b16 %v1694
      %v1735 = vunpack.c.l.b16 %v1695
      %v1736 = vunpack.c.h.b16 %v1695
      %v1737 = vunpack.c.l.b16 %v1696
      %v1738 = vunpack.c.h.b16 %v1696
      %v1739 = vunpack.c.l.b16 %v1697
      %v1740 = vunpack.c.h.b16 %v1697
      %v1741 = vunpack.c.l.b16 %v1698
      %v1742 = vunpack.c.h.b16 %v1698
      %v1743 = vunpack.c.l.b16 %v1699
      %v1744 = vunpack.c.h.b16 %v1699
      %v1745 = vunpack.c.l.b16 %v1700
      %v1746 = vunpack.c.h.b16 %v1700
      %v1747 = vunpack.c.l.b16 %v1701
      %v1748 = vunpack.c.h.b16 %v1701
      %v1749 = vunpack.c.l.b16 %v1702
      %v1750 = vunpack.c.h.b16 %v1702
      %v1751 = vpack.c.b16 %v1719, %v1719
      %v1752 = vpack.c.b16 %v1720, %v1720
      %v1753 = vpack.c.b16 %v1721, %v1721
      %v1754 = vpack.c.b16 %v1722, %v1722
      %v1755 = vpack.c.b16 %v1723, %v1723
      %v1756 = vpack.c.b16 %v1724, %v1724
      %v1757 = vpack.c.b16 %v1725, %v1725
      %v1758 = vpack.c.b16 %v1726, %v1726
      %v1759 = vpack.c.b16 %v1727, %v1727
      %v1760 = vpack.c.b16 %v1728, %v1728
      %v1761 = vpack.c.b16 %v1729, %v1729
      %v1762 = vpack.c.b16 %v1730, %v1730
      %v1763 = vpack.c.b16 %v1731, %v1731
      %v1764 = vpack.c.b16 %v1732, %v1732
      %v1765 = vpack.c.b16 %v1733, %v1733
      %v1766 = vpack.c.b16 %v1734, %v1734
      %v1767 = vpack.c.b16 %v1735, %v1735
      %v1768 = vpack.c.b16 %v1736, %v1736
      %v1769 = vpack.c.b16 %v1737, %v1737
      %v1770 = vpack.c.b16 %v1738, %v1738
      %v1771 = vpack.c.b16 %v1739, %v1739
      %v1772 = vpack.c.b16 %v1740, %v1740
      %v1773 = vpack.c.b16 %v1741, %v1741
      %v1774 = vpack.c.b16 %v1742, %v1742
      %v1775 = vpack.c.b16 %v1743, %v1743
      %v1776 = vpack.c.b16 %v1744, %v1744
      %v1777 = vpack.c.b16 %v1745, %v1745
      %v1778 = vpack.c.b16 %v1746, %v1746
      %v1779 = vpack.c.b16 %v1747, %v1747
      %v1780 = vpack.c.b16 %v1748, %v1748
      %v1781 = vpack.c.b16 %v1749, %v1749
      %v1782 = vpack.c.b16 %v1750, %v1750
      %vm1815 = vcmask 60416
      %1816 = vst.msk [vmem:[%s443] sm:$0xf] %vm1815, %v1751
      %1817 = vst.msk [vmem:[%s443 + $0x4] sm:$0xf] %vm1815, %v1752
      %1818 = vst.msk [vmem:[%s443 + $0x8] sm:$0xf] %vm1815, %v1753
      %1819 = vst.msk [vmem:[%s443 + $0xc] sm:$0xf] %vm1815, %v1754
      %1820 = vst.msk [vmem:[%s443 + $0x10] sm:$0xf] %vm1815, %v1755
      %1821 = vst.msk [vmem:[%s443 + $0x14] sm:$0xf] %vm1815, %v1756
      %1822 = vst.msk [vmem:[%s443 + $0x18] sm:$0xf] %vm1815, %v1757
      %1823 = vst.msk [vmem:[%s443 + $0x1c] sm:$0xf] %vm1815, %v1758
      %1824 = vst.msk [vmem:[%s443 + $0x20] sm:$0xf] %vm1815, %v1759
      %1825 = vst.msk [vmem:[%s443 + $0x24] sm:$0xf] %vm1815, %v1760
      %1826 = vst.msk [vmem:[%s443 + $0x28] sm:$0xf] %vm1815, %v1761
      %1827 = vst.msk [vmem:[%s443 + $0x2c] sm:$0xf] %vm1815, %v1762
      %1828 = vst.msk [vmem:[%s443 + $0x30] sm:$0xf] %vm1815, %v1763
      %1829 = vst.msk [vmem:[%s443 + $0x34] sm:$0xf] %vm1815, %v1764
      %1830 = vst.msk [vmem:[%s443 + $0x38] sm:$0xf] %vm1815, %v1765
      %1831 = vst.msk [vmem:[%s443 + $0x3c] sm:$0xf] %vm1815, %v1766
      %1832 = vst.msk [vmem:[%s443 + $0x40] sm:$0xf] %vm1815, %v1767
      %1833 = vst.msk [vmem:[%s443 + $0x44] sm:$0xf] %vm1815, %v1768
      %1834 = vst.msk [vmem:[%s443 + $0x48] sm:$0xf] %vm1815, %v1769
      %1835 = vst.msk [vmem:[%s443 + $0x4c] sm:$0xf] %vm1815, %v1770
      %1836 = vst.msk [vmem:[%s443 + $0x50] sm:$0xf] %vm1815, %v1771
      %1837 = vst.msk [vmem:[%s443 + $0x54] sm:$0xf] %vm1815, %v1772
      %1838 = vst.msk [vmem:[%s443 + $0x58] sm:$0xf] %vm1815, %v1773
      %1839 = vst.msk [vmem:[%s443 + $0x5c] sm:$0xf] %vm1815, %v1774
      %1840 = vst.msk [vmem:[%s443 + $0x60] sm:$0xf] %vm1815, %v1775
      %1841 = vst.msk [vmem:[%s443 + $0x64] sm:$0xf] %vm1815, %v1776
      %1842 = vst.msk [vmem:[%s443 + $0x68] sm:$0xf] %vm1815, %v1777
      %1843 = vst.msk [vmem:[%s443 + $0x6c] sm:$0xf] %vm1815, %v1778
      %1844 = vst.msk [vmem:[%s443 + $0x70] sm:$0xf] %vm1815, %v1779
      %1845 = vst.msk [vmem:[%s443 + $0x74] sm:$0xf] %vm1815, %v1780
      %1846 = vst.msk [vmem:[%s443 + $0x78] sm:$0xf] %vm1815, %v1781
      %1847 = vst.msk [vmem:[%s443 + $0x7c] sm:$0xf] %vm1815, %v1782
      %s1848 = smul.u32 32, %s23
      %p1849 = scmp.lt.s32.totalorder %s22, 1
      %s1850 = scalar_select %p1849, %s22, 1
      %p1851 = scmp.lt.s32.totalorder %s1848, 31
      %s1852 = scalar_select %p1851, %s1848, 31
      %s1853 = smul.addr %s1850, 32
      %s1854 = sadd.s32 %s1852, %s1853
      %s1855 = smul.addr %s1854, 4
      %s1856 = scalar_lea.vmem %s7, %s1855
      // Predicated region
      $region49: #{depthwise_separable_conv.1} parent=47 // pred_check
        %p1857 = pneg %p234
      $region50: #{depthwise_separable_conv.1} parent=47 // pred_check_branch
        %1859 = sbr.rel (%p1857) target = $region52
      $region51: #{depthwise_separable_conv.1} parent=47 // pred_region
        %s1860 = smul.u32 32, %s23
      $region52: #{depthwise_separable_conv.1} parent=47 // pred_fallthru
        _
    $region48: #{depthwise_separable_conv.1} parent=5 // pred_fallthru
      _
    %p1861 = scmp.le.s32.totalorder 2, %s13
    // Predicated region
    $region53: #{depthwise_separable_conv.1} parent=5 // pred_check
      %p1862 = pneg %p1861
    $region54: #{depthwise_separable_conv.1} parent=5 // pred_check_branch
      %1864 = sbr.rel (%p1862) target = $region56
    $region55: #{depthwise_separable_conv.1} parent=5 // pred_region
      %s1865 = ssub.s32 %s13, 2
      // Predicated region
      $region57: #{depthwise_separable_conv.1} parent=55 // pred_check
        %p1866 = pneg %p240
      $region58: #{depthwise_separable_conv.1} parent=55 // pred_check_branch
        %1868 = sbr.rel (%p1866) target = $region60
      $region59: #{depthwise_separable_conv.1} parent=55 // pred_region
        %s1869 = smul.u32 32, %s25
        %p1870 = scmp.lt.s32.totalorder %s24, 1
        %s1871 = scalar_select %p1870, %s24, 1
        %p1872 = scmp.lt.s32.totalorder %s1869, 31
        %s1873 = scalar_select %p1872, %s1869, 31
        %s1874 = smul.addr %s1871, 32
        %s1875 = sadd.s32 %s1873, %s1874
        %s1876 = smul.addr %s1875, 4
        %s1877 = scalar_lea.vmem %s7, %s1876
      $region60: #{depthwise_separable_conv.1} parent=55 // pred_fallthru
        _
    $region56: #{depthwise_separable_conv.1} parent=5 // pred_fallthru
      _
  $region6: #{depthwise_separable_conv.1} parent=0 // loop_footer
    %s17 = sadd.s32 1, %s13
  $region7: #{depthwise_separable_conv.1} parent=0 // loop_footer_branch
    %12 = sbr.rel target = $region3
  $region8: #{depthwise_separable_conv.1} parent=0 // loop_exit
    _

</llo_original>
